<compile_context>
chip_gen: v5e
topology: v5e:2x2
jax: 0.10.0
libtpu: 0.0.40
codegen_flags: <defaults>
</compile_context>

<pallas_src>
import functools

import numpy as np
import jax
import jax.numpy as jnp
from jax.experimental import pallas as pl
from jax.experimental.pallas import tpu as pltpu

LANE = 128
# 3x3 taps in (kh, kw) order; dh = kh - 1, dw = kw - 1.  Must match the weight
# reshape in _prep_weights (kh-major, kw-minor).
TAPS = tuple((dh, dw) for dh in (-1, 0, 1) for dw in (-1, 0, 1))

TARGET_LAYERS = ("conv1", "conv2")


def _round_up(x, m):
    return (x + m - 1) // m * m


# ----------------------------------------------------------------------------
# Fused kernel: one image per grid step, conv1 -> ReLU -> conv2, all in
# channel-major (C, H*W) layout.
# ----------------------------------------------------------------------------
def _fused_conv_kernel(mask_ref, x_ref, w1_ref, b1_ref, w2_ref, b2_ref,
                       feat1_ref, feat2_ref, *, hw, width, pad):
    """
    mask_ref : (2, M)          bf16  row0: valid when dw=-1 (w!=0),
                                     row1: valid when dw=+1 (w!=W-1)
    x_ref    : (1, Cin, M+2P)  bf16  zero-extended flattened image
    w1_ref   : (9, C1, Cin)    bf16  per-tap conv1 weights
    b1_ref   : (C1, 1)         f32
    w2_ref   : (9, C2, C1)     bf16  per-tap conv2 weights
    b2_ref   : (C2, 1)         f32
    feat1_ref: (1, C1, M)      f32   hooked conv1 pre-activation
    feat2_ref: (1, C2, M)      f32   hooked conv2 pre-activation
    """
    m = hw
    c1 = w1_ref.shape[1]

    mask_l = mask_ref[0:1, :]          # (1, M)
    mask_r = mask_ref[1:2, :]          # (1, M)

    def conv3x3(ext, w_ref):
        # ext: (C_in, M + 2*pad) bf16, zero outside [pad, pad+M).
        # The zero extension handles out-of-image rows (dh direction); the
        # masks handle the column wrap for dw = +/-1.
        acc = None
        for t, (dh, dw) in enumerate(TAPS):
            s = dh * width + dw
            tap = ext[:, pad + s: pad + s + m]           # (C_in, M) bf16
            if dw == -1:
                tap = tap * mask_l
            elif dw == 1:
                tap = tap * mask_r
            part = jnp.dot(w_ref[t], tap, preferred_element_type=jnp.float32)
            acc = part if acc is None else acc + part
        return acc                                        # (C_out, M) f32

    # ---- conv1 (hooked) ----
    feat1 = conv3x3(x_ref[0], w1_ref) + b1_ref[...]
    feat1_ref[0] = feat1

    # ---- ReLU: stays in VMEM as bf16, never written back to HBM ----
    act = jnp.maximum(feat1, 0.0).astype(jnp.bfloat16)            # (C1, M)
    zpad = jnp.zeros((c1, pad), jnp.bfloat16)
    act_ext = jnp.concatenate([zpad, act, zpad], axis=1)          # (C1, M+2P)

    # ---- conv2 (hooked; its ReLU output is discarded by the module) ----
    feat2_ref[0] = conv3x3(act_ext, w2_ref) + b2_ref[...]


# ----------------------------------------------------------------------------
# Wrapper
# ----------------------------------------------------------------------------
def _prep_weights(w_oihw, bias):
    """PyTorch-layout (Cout, Cin, 3, 3) -> per-tap (9, Cout, Cin) bf16."""
    cout, cin = w_oihw.shape[0], w_oihw.shape[1]
    w_taps = jnp.transpose(w_oihw, (2, 3, 0, 1)).reshape(9, cout, cin)
    return w_taps.astype(jnp.bfloat16), bias.reshape(cout, 1).astype(jnp.float32)


@jax.jit
def network_hook_forward(params, x_nchw):
    """Args: x_nchw (B, 3, H, W) f32.  Returns dict of hooked features (NCHW)."""
    b, cin, h, w = x_nchw.shape
    c1 = params["conv1"]["w"].shape[0]
    c2 = params["conv2"]["w"].shape[0]
    m = h * w
    pad = _round_up(w + 1, LANE)       # >= W+1 so every tap slice stays in range
    m_ext = m + 2 * pad

    # Channel-major flattened image (free reshape of NCHW), zero row-extension.
    x_flat = x_nchw.reshape(b, cin, m).astype(jnp.bfloat16)
    x_ext = jnp.pad(x_flat, ((0, 0), (0, 0), (pad, pad)))

    # Column-validity masks (trace-time constants).
    col = np.arange(m) % w
    masks = jnp.asarray(np.stack([col != 0, col != w - 1]), dtype=jnp.bfloat16)

    w1, b1 = _prep_weights(params["conv1"]["w"], params["conv1"]["b"])
    w2, b2 = _prep_weights(params["conv2"]["w"], params["conv2"]["b"])

    kernel = functools.partial(_fused_conv_kernel, hw=m, width=w, pad=pad)

    cost = pl.CostEstimate(
        flops=2 * b * m * 9 * (cin * c1 + c1 * c2),
        transcendentals=0,
        bytes_accessed=(x_ext.size * 2 + masks.size * 2
                        + w1.size * 2 + w2.size * 2 + b1.size * 4 + b2.size * 4
                        + b * m * (c1 + c2) * 4),
    )

    feat1, feat2 = pl.pallas_call(
        kernel,
        grid=(b,),
        in_specs=[
            pl.BlockSpec((2, m), lambda i: (0, 0)),               # masks (resident)
            pl.BlockSpec((1, cin, m_ext), lambda i: (i, 0, 0)),   # image per batch
            pl.BlockSpec((9, c1, cin), lambda i: (0, 0, 0)),      # conv1 weights
            pl.BlockSpec((c1, 1), lambda i: (0, 0)),              # conv1 bias
            pl.BlockSpec((9, c2, c1), lambda i: (0, 0, 0)),       # conv2 weights
            pl.BlockSpec((c2, 1), lambda i: (0, 0)),              # conv2 bias
        ],
        out_specs=(
            pl.BlockSpec((1, c1, m), lambda i: (i, 0, 0)),
            pl.BlockSpec((1, c2, m), lambda i: (i, 0, 0)),
        ),
        out_shape=(
            jax.ShapeDtypeStruct((b, c1, m), jnp.float32),
            jax.ShapeDtypeStruct((b, c2, m), jnp.float32),
        ),
        compiler_params=pltpu.CompilerParams(
            dimension_semantics=("parallel",)),
        cost_estimate=cost,
    )(masks, x_ext, w1, b1, w2, b2)

    # (C, H*W) channel-major is already NCHW-flat: reshape only, no transpose.
    features = {
        "conv1": feat1.reshape(b, c1, h, w),
        "conv2": feat2.reshape(b, c2, h, w),
    }
    return {layer: features[layer] for layer in TARGET_LAYERS}


def init_params(key):
    k1, k2, k3, k4 = jax.random.split(key, 4)
    return {
        "conv1": {
            "w": 0.1 * jax.random.normal(k1, (8, 3, 3, 3), jnp.float32),
            "b": 0.1 * jax.random.normal(k2, (8,), jnp.float32),
        },
        "conv2": {
            "w": 0.1 * jax.random.normal(k3, (16, 8, 3, 3), jnp.float32),
            "b": 0.1 * jax.random.normal(k4, (16,), jnp.float32),
        },
    }


if __name__ == "__main__":
    key = jax.random.PRNGKey(0)
    kp, kx = jax.random.split(key)
    params = init_params(kp)

    # B=2 gives an even parallel grid (1 image per TensorCore on v7x);
    # H=W=16 -> M = 256 pixels, a lane-dense multiple of 128.
    B, C, H, W = 2, 3, 16, 16
    x = jax.random.normal(kx, (B, C, H, W), jnp.float32)

    feats = network_hook_forward(params, x)
    feats = jax.block_until_ready(feats)

    assert feats["conv1"].shape == (B, 8, H, W), feats["conv1"].shape
    assert feats["conv2"].shape == (B, 16, H, W), feats["conv2"].shape

    # Reference conv with matched precision (bf16 operands, f32 accumulation).
    def ref_conv(x_nchw, w, b):
        y = jax.lax.conv_general_dilated(
            x_nchw.astype(jnp.bfloat16), w.astype(jnp.bfloat16),
            window_strides=(1, 1), padding="SAME",
            dimension_numbers=("NCHW", "OIHW", "NCHW"),
            preferred_element_type=jnp.float32)
        return y + b.reshape(1, -1, 1, 1)

    r1 = ref_conv(x, params["conv1"]["w"], params["conv1"]["b"])
    r2 = ref_conv(jnp.maximum(r1, 0.0), params["conv2"]["w"], params["conv2"]["b"])
    assert jnp.allclose(feats["conv1"], r1, atol=2e-3, rtol=2e-3)
    assert jnp.allclose(feats["conv2"], r2, atol=2e-3, rtol=2e-3)

    print("KERNEL_OK")
</pallas_src>

<mosaic_0001>
module attributes {stable_mosaic.version = 11 : i64} {
  func.func @_fused_conv_kernel(%arg0: i32, %arg1: memref<2x256xbf16, #tpu.memory_space<vmem>>, %arg2: memref<1x3x512xbf16, #tpu.memory_space<vmem>>, %arg3: memref<9x8x3xbf16, #tpu.memory_space<vmem>>, %arg4: memref<8x1xf32, #tpu.memory_space<vmem>>, %arg5: memref<9x16x8xbf16, #tpu.memory_space<vmem>>, %arg6: memref<16x1xf32, #tpu.memory_space<vmem>>, %arg7: memref<1x8x256xf32, #tpu.memory_space<vmem>>, %arg8: memref<1x16x256xf32, #tpu.memory_space<vmem>>) attributes {dimension_semantics = [#tpu.dimension_semantics<parallel>], iteration_bounds = array<i64: 2>, scalar_prefetch = 0 : i64, scratch_operands = 0 : i64, tpu.core_type = #tpu.core_type<tc>, window_params = [{pipeline_mode = #tpu.pipeline_mode<synchronous>, transform_indices = @transform_0, window_bounds = array<i64: 2, 256>}, {transform_indices = @transform_1, window_bounds = array<i64: 1, 3, 512>}, {pipeline_mode = #tpu.pipeline_mode<synchronous>, transform_indices = @transform_2, window_bounds = array<i64: 9, 8, 3>}, {pipeline_mode = #tpu.pipeline_mode<synchronous>, transform_indices = @transform_3, window_bounds = array<i64: 8, 1>}, {pipeline_mode = #tpu.pipeline_mode<synchronous>, transform_indices = @transform_4, window_bounds = array<i64: 9, 16, 8>}, {pipeline_mode = #tpu.pipeline_mode<synchronous>, transform_indices = @transform_5, window_bounds = array<i64: 16, 1>}, {transform_indices = @transform_6, window_bounds = array<i64: 1, 8, 256>}, {transform_indices = @transform_7, window_bounds = array<i64: 1, 16, 256>}]} {
    %c0 = arith.constant 0 : index
    %c0_0 = arith.constant 0 : index
    %0 = vector.load %arg1[%c0, %c0_0] : memref<2x256xbf16, #tpu.memory_space<vmem>>, vector<1x256xbf16>
    %c1 = arith.constant 1 : index
    %c0_1 = arith.constant 0 : index
    %1 = vector.load %arg1[%c1, %c0_1] : memref<2x256xbf16, #tpu.memory_space<vmem>>, vector<1x256xbf16>
    %c0_2 = arith.constant 0 : index
    %c0_3 = arith.constant 0 : index
    %c0_4 = arith.constant 0 : index
    %2 = vector.load %arg2[%c0_2, %c0_3, %c0_4] : memref<1x3x512xbf16, #tpu.memory_space<vmem>>, vector<1x3x512xbf16>
    %3 = vector.shape_cast %2 : vector<1x3x512xbf16> to vector<3x512xbf16>
    %4 = vector.extract_strided_slice %3 {offsets = [0, 111], sizes = [3, 256], strides = [1, 1]} : vector<3x512xbf16> to vector<3x256xbf16>
    %5 = vector.broadcast %0 : vector<1x256xbf16> to vector<3x256xbf16>
    %6 = arith.mulf %4, %5 : vector<3x256xbf16>
    %c0_5 = arith.constant 0 : index
    %c0_6 = arith.constant 0 : index
    %c0_7 = arith.constant 0 : index
    %7 = vector.load %arg3[%c0_5, %c0_6, %c0_7] : memref<9x8x3xbf16, #tpu.memory_space<vmem>>, vector<1x8x3xbf16>
    %8 = vector.shape_cast %7 : vector<1x8x3xbf16> to vector<8x3xbf16>
    %cst = arith.constant dense<0.000000e+00> : vector<8x256xf32>
    %9 = tpu.matmul %8, %6, %cst {dimension_numbers = #tpu.dot_dimension_numbers<[1], [0], [0], [1], [0, 0, 1, 1], [], []>} : vector<8x3xbf16>, vector<3x256xbf16>, vector<8x256xf32> -> vector<8x256xf32>
    %10 = vector.extract_strided_slice %3 {offsets = [0, 112], sizes = [3, 256], strides = [1, 1]} : vector<3x512xbf16> to vector<3x256xbf16>
    %c1_8 = arith.constant 1 : index
    %c0_9 = arith.constant 0 : index
    %c0_10 = arith.constant 0 : index
    %11 = vector.load %arg3[%c1_8, %c0_9, %c0_10] : memref<9x8x3xbf16, #tpu.memory_space<vmem>>, vector<1x8x3xbf16>
    %12 = vector.shape_cast %11 : vector<1x8x3xbf16> to vector<8x3xbf16>
    %cst_11 = arith.constant dense<0.000000e+00> : vector<8x256xf32>
    %13 = tpu.matmul %12, %10, %cst_11 {dimension_numbers = #tpu.dot_dimension_numbers<[1], [0], [0], [1], [0, 0, 1, 1], [], []>} : vector<8x3xbf16>, vector<3x256xbf16>, vector<8x256xf32> -> vector<8x256xf32>
    %14 = arith.addf %9, %13 : vector<8x256xf32>
    %15 = vector.extract_strided_slice %3 {offsets = [0, 113], sizes = [3, 256], strides = [1, 1]} : vector<3x512xbf16> to vector<3x256xbf16>
    %16 = vector.broadcast %1 : vector<1x256xbf16> to vector<3x256xbf16>
    %17 = arith.mulf %15, %16 : vector<3x256xbf16>
    %c2 = arith.constant 2 : index
    %c0_12 = arith.constant 0 : index
    %c0_13 = arith.constant 0 : index
    %18 = vector.load %arg3[%c2, %c0_12, %c0_13] : memref<9x8x3xbf16, #tpu.memory_space<vmem>>, vector<1x8x3xbf16>
    %19 = vector.shape_cast %18 : vector<1x8x3xbf16> to vector<8x3xbf16>
    %cst_14 = arith.constant dense<0.000000e+00> : vector<8x256xf32>
    %20 = tpu.matmul %19, %17, %cst_14 {dimension_numbers = #tpu.dot_dimension_numbers<[1], [0], [0], [1], [0, 0, 1, 1], [], []>} : vector<8x3xbf16>, vector<3x256xbf16>, vector<8x256xf32> -> vector<8x256xf32>
    %21 = arith.addf %14, %20 : vector<8x256xf32>
    %22 = vector.extract_strided_slice %3 {offsets = [0, 127], sizes = [3, 256], strides = [1, 1]} : vector<3x512xbf16> to vector<3x256xbf16>
    %23 = vector.broadcast %0 : vector<1x256xbf16> to vector<3x256xbf16>
    %24 = arith.mulf %22, %23 : vector<3x256xbf16>
    %c3 = arith.constant 3 : index
    %c0_15 = arith.constant 0 : index
    %c0_16 = arith.constant 0 : index
    %25 = vector.load %arg3[%c3, %c0_15, %c0_16] : memref<9x8x3xbf16, #tpu.memory_space<vmem>>, vector<1x8x3xbf16>
    %26 = vector.shape_cast %25 : vector<1x8x3xbf16> to vector<8x3xbf16>
    %cst_17 = arith.constant dense<0.000000e+00> : vector<8x256xf32>
    %27 = tpu.matmul %26, %24, %cst_17 {dimension_numbers = #tpu.dot_dimension_numbers<[1], [0], [0], [1], [0, 0, 1, 1], [], []>} : vector<8x3xbf16>, vector<3x256xbf16>, vector<8x256xf32> -> vector<8x256xf32>
    %28 = arith.addf %21, %27 : vector<8x256xf32>
    %29 = vector.extract_strided_slice %3 {offsets = [0, 128], sizes = [3, 256], strides = [1, 1]} : vector<3x512xbf16> to vector<3x256xbf16>
    %c4 = arith.constant 4 : index
    %c0_18 = arith.constant 0 : index
    %c0_19 = arith.constant 0 : index
    %30 = vector.load %arg3[%c4, %c0_18, %c0_19] : memref<9x8x3xbf16, #tpu.memory_space<vmem>>, vector<1x8x3xbf16>
    %31 = vector.shape_cast %30 : vector<1x8x3xbf16> to vector<8x3xbf16>
    %cst_20 = arith.constant dense<0.000000e+00> : vector<8x256xf32>
    %32 = tpu.matmul %31, %29, %cst_20 {dimension_numbers = #tpu.dot_dimension_numbers<[1], [0], [0], [1], [0, 0, 1, 1], [], []>} : vector<8x3xbf16>, vector<3x256xbf16>, vector<8x256xf32> -> vector<8x256xf32>
    %33 = arith.addf %28, %32 : vector<8x256xf32>
    %34 = vector.extract_strided_slice %3 {offsets = [0, 129], sizes = [3, 256], strides = [1, 1]} : vector<3x512xbf16> to vector<3x256xbf16>
    %35 = vector.broadcast %1 : vector<1x256xbf16> to vector<3x256xbf16>
    %36 = arith.mulf %34, %35 : vector<3x256xbf16>
    %c5 = arith.constant 5 : index
    %c0_21 = arith.constant 0 : index
    %c0_22 = arith.constant 0 : index
    %37 = vector.load %arg3[%c5, %c0_21, %c0_22] : memref<9x8x3xbf16, #tpu.memory_space<vmem>>, vector<1x8x3xbf16>
    %38 = vector.shape_cast %37 : vector<1x8x3xbf16> to vector<8x3xbf16>
    %cst_23 = arith.constant dense<0.000000e+00> : vector<8x256xf32>
    %39 = tpu.matmul %38, %36, %cst_23 {dimension_numbers = #tpu.dot_dimension_numbers<[1], [0], [0], [1], [0, 0, 1, 1], [], []>} : vector<8x3xbf16>, vector<3x256xbf16>, vector<8x256xf32> -> vector<8x256xf32>
    %40 = arith.addf %33, %39 : vector<8x256xf32>
    %41 = vector.extract_strided_slice %3 {offsets = [0, 143], sizes = [3, 256], strides = [1, 1]} : vector<3x512xbf16> to vector<3x256xbf16>
    %42 = vector.broadcast %0 : vector<1x256xbf16> to vector<3x256xbf16>
    %43 = arith.mulf %41, %42 : vector<3x256xbf16>
    %c6 = arith.constant 6 : index
    %c0_24 = arith.constant 0 : index
    %c0_25 = arith.constant 0 : index
    %44 = vector.load %arg3[%c6, %c0_24, %c0_25] : memref<9x8x3xbf16, #tpu.memory_space<vmem>>, vector<1x8x3xbf16>
    %45 = vector.shape_cast %44 : vector<1x8x3xbf16> to vector<8x3xbf16>
    %cst_26 = arith.constant dense<0.000000e+00> : vector<8x256xf32>
    %46 = tpu.matmul %45, %43, %cst_26 {dimension_numbers = #tpu.dot_dimension_numbers<[1], [0], [0], [1], [0, 0, 1, 1], [], []>} : vector<8x3xbf16>, vector<3x256xbf16>, vector<8x256xf32> -> vector<8x256xf32>
    %47 = arith.addf %40, %46 : vector<8x256xf32>
    %48 = vector.extract_strided_slice %3 {offsets = [0, 144], sizes = [3, 256], strides = [1, 1]} : vector<3x512xbf16> to vector<3x256xbf16>
    %c7 = arith.constant 7 : index
    %c0_27 = arith.constant 0 : index
    %c0_28 = arith.constant 0 : index
    %49 = vector.load %arg3[%c7, %c0_27, %c0_28] : memref<9x8x3xbf16, #tpu.memory_space<vmem>>, vector<1x8x3xbf16>
    %50 = vector.shape_cast %49 : vector<1x8x3xbf16> to vector<8x3xbf16>
    %cst_29 = arith.constant dense<0.000000e+00> : vector<8x256xf32>
    %51 = tpu.matmul %50, %48, %cst_29 {dimension_numbers = #tpu.dot_dimension_numbers<[1], [0], [0], [1], [0, 0, 1, 1], [], []>} : vector<8x3xbf16>, vector<3x256xbf16>, vector<8x256xf32> -> vector<8x256xf32>
    %52 = arith.addf %47, %51 : vector<8x256xf32>
    %53 = vector.extract_strided_slice %3 {offsets = [0, 145], sizes = [3, 256], strides = [1, 1]} : vector<3x512xbf16> to vector<3x256xbf16>
    %54 = vector.broadcast %1 : vector<1x256xbf16> to vector<3x256xbf16>
    %55 = arith.mulf %53, %54 : vector<3x256xbf16>
    %c8 = arith.constant 8 : index
    %c0_30 = arith.constant 0 : index
    %c0_31 = arith.constant 0 : index
    %56 = vector.load %arg3[%c8, %c0_30, %c0_31] : memref<9x8x3xbf16, #tpu.memory_space<vmem>>, vector<1x8x3xbf16>
    %57 = vector.shape_cast %56 : vector<1x8x3xbf16> to vector<8x3xbf16>
    %cst_32 = arith.constant dense<0.000000e+00> : vector<8x256xf32>
    %58 = tpu.matmul %57, %55, %cst_32 {dimension_numbers = #tpu.dot_dimension_numbers<[1], [0], [0], [1], [0, 0, 1, 1], [], []>} : vector<8x3xbf16>, vector<3x256xbf16>, vector<8x256xf32> -> vector<8x256xf32>
    %59 = arith.addf %52, %58 : vector<8x256xf32>
    %c0_33 = arith.constant 0 : index
    %c0_34 = arith.constant 0 : index
    %60 = vector.load %arg4[%c0_33, %c0_34] : memref<8x1xf32, #tpu.memory_space<vmem>>, vector<8x1xf32>
    %61 = vector.broadcast %60 : vector<8x1xf32> to vector<8x256xf32>
    %62 = arith.addf %59, %61 : vector<8x256xf32>
    %c0_35 = arith.constant 0 : index
    %c0_36 = arith.constant 0 : index
    %c0_37 = arith.constant 0 : index
    %63 = vector.load %arg7[%c0_35, %c0_36, %c0_37] : memref<1x8x256xf32, #tpu.memory_space<vmem>>, vector<1x8x256xf32>
    %64 = vector.shape_cast %63 : vector<1x8x256xf32> to vector<8x256xf32>
    %65 = vector.shape_cast %62 : vector<8x256xf32> to vector<1x8x256xf32>
    tpu.vector_store %arg7[%c0_35, %c0_36, %c0_37], %65 {strides = array<i32>} : memref<1x8x256xf32, #tpu.memory_space<vmem>>, vector<1x8x256xf32>,
    %cst_38 = arith.constant 0.000000e+00 : f32
    %66 = vector.broadcast %cst_38 : f32 to vector<8x256xf32>
    %67 = arith.maximumf %62, %66 : vector<8x256xf32>
    %68 = arith.truncf %67 : vector<8x256xf32> to vector<8x256xbf16>
    %cst_39 = arith.constant 0.000000e+00 : bf16
    %69 = vector.broadcast %cst_39 : bf16 to vector<8x128xbf16>
    %70 = tpu.concatenate %69, %68, %69 in 1 : vector<8x128xbf16>, vector<8x256xbf16>, vector<8x128xbf16> -> vector<8x512xbf16>
    %71 = vector.extract_strided_slice %70 {offsets = [0, 111], sizes = [8, 256], strides = [1, 1]} : vector<8x512xbf16> to vector<8x256xbf16>
    %72 = vector.broadcast %0 : vector<1x256xbf16> to vector<8x256xbf16>
    %73 = arith.mulf %71, %72 : vector<8x256xbf16>
    %c0_40 = arith.constant 0 : index
    %c0_41 = arith.constant 0 : index
    %c0_42 = arith.constant 0 : index
    %74 = vector.load %arg5[%c0_40, %c0_41, %c0_42] : memref<9x16x8xbf16, #tpu.memory_space<vmem>>, vector<1x16x8xbf16>
    %75 = vector.shape_cast %74 : vector<1x16x8xbf16> to vector<16x8xbf16>
    %cst_43 = arith.constant dense<0.000000e+00> : vector<16x256xf32>
    %76 = tpu.matmul %75, %73, %cst_43 {dimension_numbers = #tpu.dot_dimension_numbers<[1], [0], [0], [1], [0, 0, 1, 1], [], []>} : vector<16x8xbf16>, vector<8x256xbf16>, vector<16x256xf32> -> vector<16x256xf32>
    %77 = vector.extract_strided_slice %70 {offsets = [0, 112], sizes = [8, 256], strides = [1, 1]} : vector<8x512xbf16> to vector<8x256xbf16>
    %c1_44 = arith.constant 1 : index
    %c0_45 = arith.constant 0 : index
    %c0_46 = arith.constant 0 : index
    %78 = vector.load %arg5[%c1_44, %c0_45, %c0_46] : memref<9x16x8xbf16, #tpu.memory_space<vmem>>, vector<1x16x8xbf16>
    %79 = vector.shape_cast %78 : vector<1x16x8xbf16> to vector<16x8xbf16>
    %cst_47 = arith.constant dense<0.000000e+00> : vector<16x256xf32>
    %80 = tpu.matmul %79, %77, %cst_47 {dimension_numbers = #tpu.dot_dimension_numbers<[1], [0], [0], [1], [0, 0, 1, 1], [], []>} : vector<16x8xbf16>, vector<8x256xbf16>, vector<16x256xf32> -> vector<16x256xf32>
    %81 = arith.addf %76, %80 : vector<16x256xf32>
    %82 = vector.extract_strided_slice %70 {offsets = [0, 113], sizes = [8, 256], strides = [1, 1]} : vector<8x512xbf16> to vector<8x256xbf16>
    %83 = vector.broadcast %1 : vector<1x256xbf16> to vector<8x256xbf16>
    %84 = arith.mulf %82, %83 : vector<8x256xbf16>
    %c2_48 = arith.constant 2 : index
    %c0_49 = arith.constant 0 : index
    %c0_50 = arith.constant 0 : index
    %85 = vector.load %arg5[%c2_48, %c0_49, %c0_50] : memref<9x16x8xbf16, #tpu.memory_space<vmem>>, vector<1x16x8xbf16>
    %86 = vector.shape_cast %85 : vector<1x16x8xbf16> to vector<16x8xbf16>
    %cst_51 = arith.constant dense<0.000000e+00> : vector<16x256xf32>
    %87 = tpu.matmul %86, %84, %cst_51 {dimension_numbers = #tpu.dot_dimension_numbers<[1], [0], [0], [1], [0, 0, 1, 1], [], []>} : vector<16x8xbf16>, vector<8x256xbf16>, vector<16x256xf32> -> vector<16x256xf32>
    %88 = arith.addf %81, %87 : vector<16x256xf32>
    %89 = vector.extract_strided_slice %70 {offsets = [0, 127], sizes = [8, 256], strides = [1, 1]} : vector<8x512xbf16> to vector<8x256xbf16>
    %90 = vector.broadcast %0 : vector<1x256xbf16> to vector<8x256xbf16>
    %91 = arith.mulf %89, %90 : vector<8x256xbf16>
    %c3_52 = arith.constant 3 : index
    %c0_53 = arith.constant 0 : index
    %c0_54 = arith.constant 0 : index
    %92 = vector.load %arg5[%c3_52, %c0_53, %c0_54] : memref<9x16x8xbf16, #tpu.memory_space<vmem>>, vector<1x16x8xbf16>
    %93 = vector.shape_cast %92 : vector<1x16x8xbf16> to vector<16x8xbf16>
    %cst_55 = arith.constant dense<0.000000e+00> : vector<16x256xf32>
    %94 = tpu.matmul %93, %91, %cst_55 {dimension_numbers = #tpu.dot_dimension_numbers<[1], [0], [0], [1], [0, 0, 1, 1], [], []>} : vector<16x8xbf16>, vector<8x256xbf16>, vector<16x256xf32> -> vector<16x256xf32>
    %95 = arith.addf %88, %94 : vector<16x256xf32>
    %96 = vector.extract_strided_slice %70 {offsets = [0, 128], sizes = [8, 256], strides = [1, 1]} : vector<8x512xbf16> to vector<8x256xbf16>
    %c4_56 = arith.constant 4 : index
    %c0_57 = arith.constant 0 : index
    %c0_58 = arith.constant 0 : index
    %97 = vector.load %arg5[%c4_56, %c0_57, %c0_58] : memref<9x16x8xbf16, #tpu.memory_space<vmem>>, vector<1x16x8xbf16>
    %98 = vector.shape_cast %97 : vector<1x16x8xbf16> to vector<16x8xbf16>
    %cst_59 = arith.constant dense<0.000000e+00> : vector<16x256xf32>
    %99 = tpu.matmul %98, %96, %cst_59 {dimension_numbers = #tpu.dot_dimension_numbers<[1], [0], [0], [1], [0, 0, 1, 1], [], []>} : vector<16x8xbf16>, vector<8x256xbf16>, vector<16x256xf32> -> vector<16x256xf32>
    %100 = arith.addf %95, %99 : vector<16x256xf32>
    %101 = vector.extract_strided_slice %70 {offsets = [0, 129], sizes = [8, 256], strides = [1, 1]} : vector<8x512xbf16> to vector<8x256xbf16>
    %102 = vector.broadcast %1 : vector<1x256xbf16> to vector<8x256xbf16>
    %103 = arith.mulf %101, %102 : vector<8x256xbf16>
    %c5_60 = arith.constant 5 : index
    %c0_61 = arith.constant 0 : index
    %c0_62 = arith.constant 0 : index
    %104 = vector.load %arg5[%c5_60, %c0_61, %c0_62] : memref<9x16x8xbf16, #tpu.memory_space<vmem>>, vector<1x16x8xbf16>
    %105 = vector.shape_cast %104 : vector<1x16x8xbf16> to vector<16x8xbf16>
    %cst_63 = arith.constant dense<0.000000e+00> : vector<16x256xf32>
    %106 = tpu.matmul %105, %103, %cst_63 {dimension_numbers = #tpu.dot_dimension_numbers<[1], [0], [0], [1], [0, 0, 1, 1], [], []>} : vector<16x8xbf16>, vector<8x256xbf16>, vector<16x256xf32> -> vector<16x256xf32>
    %107 = arith.addf %100, %106 : vector<16x256xf32>
    %108 = vector.extract_strided_slice %70 {offsets = [0, 143], sizes = [8, 256], strides = [1, 1]} : vector<8x512xbf16> to vector<8x256xbf16>
    %109 = vector.broadcast %0 : vector<1x256xbf16> to vector<8x256xbf16>
    %110 = arith.mulf %108, %109 : vector<8x256xbf16>
    %c6_64 = arith.constant 6 : index
    %c0_65 = arith.constant 0 : index
    %c0_66 = arith.constant 0 : index
    %111 = vector.load %arg5[%c6_64, %c0_65, %c0_66] : memref<9x16x8xbf16, #tpu.memory_space<vmem>>, vector<1x16x8xbf16>
    %112 = vector.shape_cast %111 : vector<1x16x8xbf16> to vector<16x8xbf16>
    %cst_67 = arith.constant dense<0.000000e+00> : vector<16x256xf32>
    %113 = tpu.matmul %112, %110, %cst_67 {dimension_numbers = #tpu.dot_dimension_numbers<[1], [0], [0], [1], [0, 0, 1, 1], [], []>} : vector<16x8xbf16>, vector<8x256xbf16>, vector<16x256xf32> -> vector<16x256xf32>
    %114 = arith.addf %107, %113 : vector<16x256xf32>
    %115 = vector.extract_strided_slice %70 {offsets = [0, 144], sizes = [8, 256], strides = [1, 1]} : vector<8x512xbf16> to vector<8x256xbf16>
    %c7_68 = arith.constant 7 : index
    %c0_69 = arith.constant 0 : index
    %c0_70 = arith.constant 0 : index
    %116 = vector.load %arg5[%c7_68, %c0_69, %c0_70] : memref<9x16x8xbf16, #tpu.memory_space<vmem>>, vector<1x16x8xbf16>
    %117 = vector.shape_cast %116 : vector<1x16x8xbf16> to vector<16x8xbf16>
    %cst_71 = arith.constant dense<0.000000e+00> : vector<16x256xf32>
    %118 = tpu.matmul %117, %115, %cst_71 {dimension_numbers = #tpu.dot_dimension_numbers<[1], [0], [0], [1], [0, 0, 1, 1], [], []>} : vector<16x8xbf16>, vector<8x256xbf16>, vector<16x256xf32> -> vector<16x256xf32>
    %119 = arith.addf %114, %118 : vector<16x256xf32>
    %120 = vector.extract_strided_slice %70 {offsets = [0, 145], sizes = [8, 256], strides = [1, 1]} : vector<8x512xbf16> to vector<8x256xbf16>
    %121 = vector.broadcast %1 : vector<1x256xbf16> to vector<8x256xbf16>
    %122 = arith.mulf %120, %121 : vector<8x256xbf16>
    %c8_72 = arith.constant 8 : index
    %c0_73 = arith.constant 0 : index
    %c0_74 = arith.constant 0 : index
    %123 = vector.load %arg5[%c8_72, %c0_73, %c0_74] : memref<9x16x8xbf16, #tpu.memory_space<vmem>>, vector<1x16x8xbf16>
    %124 = vector.shape_cast %123 : vector<1x16x8xbf16> to vector<16x8xbf16>
    %cst_75 = arith.constant dense<0.000000e+00> : vector<16x256xf32>
    %125 = tpu.matmul %124, %122, %cst_75 {dimension_numbers = #tpu.dot_dimension_numbers<[1], [0], [0], [1], [0, 0, 1, 1], [], []>} : vector<16x8xbf16>, vector<8x256xbf16>, vector<16x256xf32> -> vector<16x256xf32>
    %126 = arith.addf %119, %125 : vector<16x256xf32>
    %c0_76 = arith.constant 0 : index
    %c0_77 = arith.constant 0 : index
    %127 = vector.load %arg6[%c0_76, %c0_77] : memref<16x1xf32, #tpu.memory_space<vmem>>, vector<16x1xf32>
    %128 = vector.broadcast %127 : vector<16x1xf32> to vector<16x256xf32>
    %129 = arith.addf %126, %128 : vector<16x256xf32>
    %c0_78 = arith.constant 0 : index
    %c0_79 = arith.constant 0 : index
    %c0_80 = arith.constant 0 : index
    %130 = vector.load %arg8[%c0_78, %c0_79, %c0_80] : memref<1x16x256xf32, #tpu.memory_space<vmem>>, vector<1x16x256xf32>
    %131 = vector.shape_cast %130 : vector<1x16x256xf32> to vector<16x256xf32>
    %132 = vector.shape_cast %129 : vector<16x256xf32> to vector<1x16x256xf32>
    tpu.vector_store %arg8[%c0_78, %c0_79, %c0_80], %132 {strides = array<i32>} : memref<1x16x256xf32, #tpu.memory_space<vmem>>, vector<1x16x256xf32>,
    return
  }
  func.func @transform_0(%arg0: i32) -> (i32, i32) {
    %c0_i32 = arith.constant 0 : i32
    %c0_i32_0 = arith.constant 0 : i32
    %c0_i32_1 = arith.constant 0 : i32
    return %c0_i32, %c0_i32_0 : i32, i32
  }
  func.func @transform_1(%arg0: i32) -> (i32, i32, i32) {
    %c0_i32 = arith.constant 0 : i32
    %c0_i32_0 = arith.constant 0 : i32
    %c0_i32_1 = arith.constant 0 : i32
    return %arg0, %c0_i32, %c0_i32_0 : i32, i32, i32
  }
  func.func @transform_2(%arg0: i32) -> (i32, i32, i32) {
    %c0_i32 = arith.constant 0 : i32
    %c0_i32_0 = arith.constant 0 : i32
    %c0_i32_1 = arith.constant 0 : i32
    %c0_i32_2 = arith.constant 0 : i32
    return %c0_i32, %c0_i32_0, %c0_i32_1 : i32, i32, i32
  }
  func.func @transform_3(%arg0: i32) -> (i32, i32) {
    %c0_i32 = arith.constant 0 : i32
    %c0_i32_0 = arith.constant 0 : i32
    %c0_i32_1 = arith.constant 0 : i32
    return %c0_i32, %c0_i32_0 : i32, i32
  }
  func.func @transform_4(%arg0: i32) -> (i32, i32, i32) {
    %c0_i32 = arith.constant 0 : i32
    %c0_i32_0 = arith.constant 0 : i32
    %c0_i32_1 = arith.constant 0 : i32
    %c0_i32_2 = arith.constant 0 : i32
    return %c0_i32, %c0_i32_0, %c0_i32_1 : i32, i32, i32
  }
  func.func @transform_5(%arg0: i32) -> (i32, i32) {
    %c0_i32 = arith.constant 0 : i32
    %c0_i32_0 = arith.constant 0 : i32
    %c0_i32_1 = arith.constant 0 : i32
    return %c0_i32, %c0_i32_0 : i32, i32
  }
  func.func @transform_6(%arg0: i32) -> (i32, i32, i32) {
    %c0_i32 = arith.constant 0 : i32
    %c0_i32_0 = arith.constant 0 : i32
    %c0_i32_1 = arith.constant 0 : i32
    return %arg0, %c0_i32, %c0_i32_0 : i32, i32, i32
  }
  func.func @transform_7(%arg0: i32) -> (i32, i32, i32) {
    %c0_i32 = arith.constant 0 : i32
    %c0_i32_0 = arith.constant 0 : i32
    %c0_i32_1 = arith.constant 0 : i32
    return %arg0, %c0_i32, %c0_i32_0 : i32, i32, i32
  }
}

</mosaic_0001>

<llo_original>
// kernel: network_hook_forward.1
$region0: #{network_hook_forward.1}
  #allocation0 [shape = 'u32[]', space=smem, size = 0x4, offset = 0x4, fixed_abs, tag = 'smem constant byte address 0x4 - core index']
  #allocation1 [shape = 'u32[72,128]{1,0:T(1,128)}', space=vmem, size = 0x9000, scoped, tag = 'internal scratch']
  %s0 = inlined_call_operand.vmem [shape: bf16[2,256], index: 0, kind: input, shape index: {}]
  %s1 = inlined_call_operand.vmem [shape: bf16[2,3,512], index: 1, kind: input, shape index: {}]
  %s2 = inlined_call_operand.vmem [shape: bf16[9,8,3], index: 2, kind: input, shape index: {}]
  %s3 = inlined_call_operand.vmem [shape: f32[8,1], index: 3, kind: input, shape index: {}]
  %s4 = inlined_call_operand.vmem [shape: bf16[9,16,8], index: 4, kind: input, shape index: {}]
  %s5 = inlined_call_operand.vmem [shape: f32[16,1], index: 5, kind: input, shape index: {}]
  %s6 = inlined_call_operand.vmem [shape: f32[2,8,256], index: 6, kind: output, shape index: {0}]
  %s7 = inlined_call_operand.vmem [shape: f32[2,16,256], index: 7, kind: output, shape index: {1}]
  %8 = xla_tuple %s6, %s7
  %s9 = sld [smem:[#allocation0]]
  $region65: #{network_hook_forward.1} parent=0
    _
  %s11 = ssub.s32 1, %s9
  %s12 = scalar_select 0, %s11, %s9
  loop: start=0, step=1, limit=4
  $region2: #{network_hook_forward.1} parent=0 // loop_pre_header
    _
  $region3: #{network_hook_forward.1} parent=0 // loop_header
    %s14 = sphi 0, %s18
    %p15 = scmp.ge.s32.totalorder %s14, 4
    %s22 = sphi 0, %s22
    %s24 = sphi 0, %s22
    %s25 = sphi 0, %s24
    %s39 = sphi 0, %s25
    %s45 = sphi 0, %s47
    %s48 = sphi 0, %s45
    %s49 = sphi 0, %s48
    %s65 = sphi 0, %s49
    %s69 = sphi 0, %s69
    %s71 = sphi 0, %s69
    %s72 = sphi 0, %s71
    %s86 = sphi 0, %s72
    %s90 = sphi 0, %s90
    %s92 = sphi 0, %s90
    %s93 = sphi 0, %s92
    %s107 = sphi 0, %s93
    %s111 = sphi 0, %s111
    %s113 = sphi 0, %s111
    %s114 = sphi 0, %s113
    %s128 = sphi 0, %s114
    %s132 = sphi 0, %s132
    %s134 = sphi 0, %s132
    %s135 = sphi 0, %s134
    %s149 = sphi 0, %s135
    %s155 = sphi 0, %s157
    %s158 = sphi 0, %s155
    %s159 = sphi 0, %s158
    %s175 = sphi 0, %s159
    %s181 = sphi 0, %s183
    %s184 = sphi 0, %s181
    %s185 = sphi 0, %s184
    %s201 = sphi 0, %s185
  $region4: #{network_hook_forward.1} parent=0 // loop_header_branch
    %17 = sbr.rel (%p15) target = $region8
  $region5: #{network_hook_forward.1} parent=0 // loop_body
    %s19 = ssub.s32 %s14, 1
    %s20 = ssub.s32 %s14, 2
    %s21 = sadd.s32 %s14, 1
    %s23 = sadd.s32 %s22, 1
    %p26 = scmp.eq.s32.totalorder %s14, 1
    %p27 = scmp.ne.s32.totalorder %s22, %s24
    %p28 = scmp.eq.s32.totalorder %s14, 0
    %p29 = por %p27, %p28
    %p30 = scmp.ne.s32.totalorder %s22, %s24
    %p31 = scmp.eq.s32.totalorder %s19, 1
    %p32 = por %p30, %p31
    %p33 = scmp.ne.s32.totalorder %s24, %s25
    %p34 = scmp.eq.s32.totalorder %s19, 0
    %p35 = por %p33, %p34
    %p36 = scmp.ne.s32.totalorder %s24, %s25
    %p37 = scmp.eq.s32.totalorder %s20, 1
    %p38 = por %p36, %p37
    %p40 = scmp.ne.s32.totalorder %s25, %s39
    %p41 = scmp.eq.s32.totalorder %s20, 0
    %p42 = por %p40, %p41
    %s43 = ssub.s32 %s14, %s21
    %p44 = scmp.eq.s32.totalorder %s43, 0
    %s46 = sadd.s32 %s45, 1
    %s47 = scalar_select %p44, %s45, %s46
    %p50 = pneg %p44
    %p51 = scmp.eq.s32.totalorder %s14, 1
    %p52 = por %p50, %p51
    %p53 = scmp.ne.s32.totalorder %s45, %s48
    %p54 = scmp.eq.s32.totalorder %s14, 0
    %p55 = por %p53, %p54
    %p56 = scmp.ne.s32.totalorder %s45, %s48
    %p57 = scmp.eq.s32.totalorder %s19, 1
    %p58 = por %p56, %p57
    %p59 = scmp.ne.s32.totalorder %s48, %s49
    %p60 = scmp.eq.s32.totalorder %s19, 0
    %p61 = por %p59, %p60
    %p62 = scmp.ne.s32.totalorder %s48, %s49
    %p63 = scmp.eq.s32.totalorder %s20, 1
    %p64 = por %p62, %p63
    %p66 = scmp.ne.s32.totalorder %s49, %s65
    %p67 = scmp.eq.s32.totalorder %s20, 0
    %p68 = por %p66, %p67
    %s70 = sadd.s32 %s69, 1
    %p73 = scmp.eq.s32.totalorder %s14, 1
    %p74 = scmp.ne.s32.totalorder %s69, %s71
    %p75 = scmp.eq.s32.totalorder %s14, 0
    %p76 = por %p74, %p75
    %p77 = scmp.ne.s32.totalorder %s69, %s71
    %p78 = scmp.eq.s32.totalorder %s19, 1
    %p79 = por %p77, %p78
    %p80 = scmp.ne.s32.totalorder %s71, %s72
    %p81 = scmp.eq.s32.totalorder %s19, 0
    %p82 = por %p80, %p81
    %p83 = scmp.ne.s32.totalorder %s71, %s72
    %p84 = scmp.eq.s32.totalorder %s20, 1
    %p85 = por %p83, %p84
    %p87 = scmp.ne.s32.totalorder %s72, %s86
    %p88 = scmp.eq.s32.totalorder %s20, 0
    %p89 = por %p87, %p88
    %s91 = sadd.s32 %s90, 1
    %p94 = scmp.eq.s32.totalorder %s14, 1
    %p95 = scmp.ne.s32.totalorder %s90, %s92
    %p96 = scmp.eq.s32.totalorder %s14, 0
    %p97 = por %p95, %p96
    %p98 = scmp.ne.s32.totalorder %s90, %s92
    %p99 = scmp.eq.s32.totalorder %s19, 1
    %p100 = por %p98, %p99
    %p101 = scmp.ne.s32.totalorder %s92, %s93
    %p102 = scmp.eq.s32.totalorder %s19, 0
    %p103 = por %p101, %p102
    %p104 = scmp.ne.s32.totalorder %s92, %s93
    %p105 = scmp.eq.s32.totalorder %s20, 1
    %p106 = por %p104, %p105
    %p108 = scmp.ne.s32.totalorder %s93, %s107
    %p109 = scmp.eq.s32.totalorder %s20, 0
    %p110 = por %p108, %p109
    %s112 = sadd.s32 %s111, 1
    %p115 = scmp.eq.s32.totalorder %s14, 1
    %p116 = scmp.ne.s32.totalorder %s111, %s113
    %p117 = scmp.eq.s32.totalorder %s14, 0
    %p118 = por %p116, %p117
    %p119 = scmp.ne.s32.totalorder %s111, %s113
    %p120 = scmp.eq.s32.totalorder %s19, 1
    %p121 = por %p119, %p120
    %p122 = scmp.ne.s32.totalorder %s113, %s114
    %p123 = scmp.eq.s32.totalorder %s19, 0
    %p124 = por %p122, %p123
    %p125 = scmp.ne.s32.totalorder %s113, %s114
    %p126 = scmp.eq.s32.totalorder %s20, 1
    %p127 = por %p125, %p126
    %p129 = scmp.ne.s32.totalorder %s114, %s128
    %p130 = scmp.eq.s32.totalorder %s20, 0
    %p131 = por %p129, %p130
    %s133 = sadd.s32 %s132, 1
    %p136 = scmp.eq.s32.totalorder %s14, 1
    %p137 = scmp.ne.s32.totalorder %s132, %s134
    %p138 = scmp.eq.s32.totalorder %s14, 0
    %p139 = por %p137, %p138
    %p140 = scmp.ne.s32.totalorder %s132, %s134
    %p141 = scmp.eq.s32.totalorder %s19, 1
    %p142 = por %p140, %p141
    %p143 = scmp.ne.s32.totalorder %s134, %s135
    %p144 = scmp.eq.s32.totalorder %s19, 0
    %p145 = por %p143, %p144
    %p146 = scmp.ne.s32.totalorder %s134, %s135
    %p147 = scmp.eq.s32.totalorder %s20, 1
    %p148 = por %p146, %p147
    %p150 = scmp.ne.s32.totalorder %s135, %s149
    %p151 = scmp.eq.s32.totalorder %s20, 0
    %p152 = por %p150, %p151
    %s153 = ssub.s32 %s14, %s21
    %p154 = scmp.eq.s32.totalorder %s153, 0
    %s156 = sadd.s32 %s155, 1
    %s157 = scalar_select %p154, %s155, %s156
    %p160 = pneg %p154
    %p161 = scmp.eq.s32.totalorder %s14, 1
    %p162 = por %p160, %p161
    %p163 = scmp.ne.s32.totalorder %s155, %s158
    %p164 = scmp.eq.s32.totalorder %s14, 0
    %p165 = por %p163, %p164
    %p166 = scmp.ne.s32.totalorder %s155, %s158
    %p167 = scmp.eq.s32.totalorder %s19, 1
    %p168 = por %p166, %p167
    %p169 = scmp.ne.s32.totalorder %s158, %s159
    %p170 = scmp.eq.s32.totalorder %s19, 0
    %p171 = por %p169, %p170
    %p172 = scmp.ne.s32.totalorder %s158, %s159
    %p173 = scmp.eq.s32.totalorder %s20, 1
    %p174 = por %p172, %p173
    %p176 = scmp.ne.s32.totalorder %s159, %s175
    %p177 = scmp.eq.s32.totalorder %s20, 0
    %p178 = por %p176, %p177
    %s179 = ssub.s32 %s14, %s21
    %p180 = scmp.eq.s32.totalorder %s179, 0
    %s182 = sadd.s32 %s181, 1
    %s183 = scalar_select %p180, %s181, %s182
    %p186 = pneg %p180
    %p187 = scmp.eq.s32.totalorder %s14, 1
    %p188 = por %p186, %p187
    %p189 = scmp.ne.s32.totalorder %s181, %s184
    %p190 = scmp.eq.s32.totalorder %s14, 0
    %p191 = por %p189, %p190
    %p192 = scmp.ne.s32.totalorder %s181, %s184
    %p193 = scmp.eq.s32.totalorder %s19, 1
    %p194 = por %p192, %p193
    %p195 = scmp.ne.s32.totalorder %s184, %s185
    %p196 = scmp.eq.s32.totalorder %s19, 0
    %p197 = por %p195, %p196
    %p198 = scmp.ne.s32.totalorder %s184, %s185
    %p199 = scmp.eq.s32.totalorder %s20, 1
    %p200 = por %p198, %p199
    %p202 = scmp.ne.s32.totalorder %s185, %s201
    %p203 = scmp.eq.s32.totalorder %s20, 0
    %p204 = por %p202, %p203
    %p205 = scmp.le.s32.totalorder 1, %s14
    %p206 = scmp.lt.s32.totalorder %s14, 3
    %p207 = pnand %p205, %p206
    %p208 = pneg %p207
    // Predicated region
    $region9: #{network_hook_forward.1} parent=5 // pred_check
      _
    $region10: #{network_hook_forward.1} parent=5 // pred_check_branch
      %210 = sbr.rel (%p207) target = $region12
    $region11: #{network_hook_forward.1} parent=5 // pred_region
      %s211 = ssub.s32 %s14, 1
      // Predicated region
      $region13: #{network_hook_forward.1} parent=11 // pred_check
        %p212 = pneg %p35
      $region14: #{network_hook_forward.1} parent=11 // pred_check_branch
        %214 = sbr.rel (%p212) target = $region16
      $region15: #{network_hook_forward.1} parent=11 // pred_region
        _
      $region16: #{network_hook_forward.1} parent=11 // pred_fallthru
        _
      // Predicated region
      $region17: #{network_hook_forward.1} parent=11 // pred_check
        %p215 = pneg %p82
      $region18: #{network_hook_forward.1} parent=11 // pred_check_branch
        %217 = sbr.rel (%p215) target = $region20
      $region19: #{network_hook_forward.1} parent=11 // pred_region
        _
      $region20: #{network_hook_forward.1} parent=11 // pred_fallthru
        _
      // Predicated region
      $region21: #{network_hook_forward.1} parent=11 // pred_check
        %p218 = pneg %p103
      $region22: #{network_hook_forward.1} parent=11 // pred_check_branch
        %220 = sbr.rel (%p218) target = $region24
      $region23: #{network_hook_forward.1} parent=11 // pred_region
        _
      $region24: #{network_hook_forward.1} parent=11 // pred_fallthru
        _
      // Predicated region
      $region25: #{network_hook_forward.1} parent=11 // pred_check
        %p221 = pneg %p124
      $region26: #{network_hook_forward.1} parent=11 // pred_check_branch
        %223 = sbr.rel (%p221) target = $region28
      $region27: #{network_hook_forward.1} parent=11 // pred_region
        _
      $region28: #{network_hook_forward.1} parent=11 // pred_fallthru
        _
      // Predicated region
      $region29: #{network_hook_forward.1} parent=11 // pred_check
        %p224 = pneg %p145
      $region30: #{network_hook_forward.1} parent=11 // pred_check_branch
        %226 = sbr.rel (%p224) target = $region32
      $region31: #{network_hook_forward.1} parent=11 // pred_region
        _
      $region32: #{network_hook_forward.1} parent=11 // pred_fallthru
        _
    $region12: #{network_hook_forward.1} parent=5 // pred_fallthru
      _
    %p227 = scmp.lt.s32.totalorder %s14, 2
    // Predicated region
    $region33: #{network_hook_forward.1} parent=5 // pred_check
      %p228 = pneg %p227
    $region34: #{network_hook_forward.1} parent=5 // pred_check_branch
      %230 = sbr.rel (%p228) target = $region36
    $region35: #{network_hook_forward.1} parent=5 // pred_region
      // Predicated region
      $region37: #{network_hook_forward.1} parent=35 // pred_check
        %p231 = pneg %p55
      $region38: #{network_hook_forward.1} parent=35 // pred_check_branch
        %233 = sbr.rel (%p231) target = $region40
      $region39: #{network_hook_forward.1} parent=35 // pred_region
        %p234 = scmp.lt.s32.totalorder %s14, 1
        %s235 = scalar_select %p234, %s14, 1
        %s236 = smul.addr %s235, 4
        %s237 = smul.addr %s236, 2
        %s238 = scalar_lea.vmem %s1, %s237
      $region40: #{network_hook_forward.1} parent=35 // pred_fallthru
        _
    $region36: #{network_hook_forward.1} parent=5 // pred_fallthru
      _
    %p239 = scmp.le.s32.totalorder 1, %s14
    %p240 = scmp.lt.s32.totalorder %s14, 3
    %p241 = pnand %p239, %p240
    %p242 = pneg %p241
    // Predicated region
    $region41: #{network_hook_forward.1} parent=5 // pred_check
      _
    $region42: #{network_hook_forward.1} parent=5 // pred_check_branch
      %244 = sbr.rel (%p241) target = $region44
    $region43: #{network_hook_forward.1} parent=5 // pred_region
      %s245 = ssub.s32 %s14, 1
      %p246 = pneg %p35
      %p247 = pneg %p32
      %p248 = scmp.lt.s32.totalorder %s19, 1
      %s249 = scalar_select %p248, %s19, 1
      %s250 = smul.addr %s249, 4
      %s251 = smul.addr %s250, 2
      %s252 = scalar_lea.vmem %s1, %s251
      %p253 = pneg %p61
      %p254 = pneg %p58
      %p255 = pneg %p82
      %p256 = pneg %p79
      %p257 = pneg %p103
      %p258 = pneg %p100
      %p259 = pneg %p124
      %p260 = pneg %p121
      %p261 = pneg %p145
      %p262 = pneg %p142
      %p263 = pneg %p171
      %p264 = pneg %p168
      %p265 = scmp.lt.s32.totalorder %s19, 1
      %s266 = scalar_select %p265, %s19, 1
      %s267 = smul.addr %s266, 2
      %s268 = smul.addr %s267, 8
      %s269 = scalar_lea.vmem %s6, %s268
      %p270 = pneg %p197
      %p271 = pneg %p194
      %p272 = scmp.lt.s32.totalorder %s19, 1
      %s273 = scalar_select %p272, %s19, 1
      %s274 = smul.addr %s273, 4
      %s275 = smul.addr %s274, 8
      %s276 = scalar_lea.vmem %s7, %s275
      %p277 = scmp.lt.s32.totalorder %s19, 1
      %s278 = scalar_select %p277, %s19, 1
      %s279 = smul.addr %s278, 4
      %s280 = smul.addr %s279, 2
      %s281 = scalar_lea.vmem %s1, %s280
      %p282 = scmp.lt.s32.totalorder %s19, 1
      %s283 = scalar_select %p282, %s19, 1
      %s284 = smul.addr %s283, 2
      %s285 = smul.addr %s284, 8
      %s286 = scalar_lea.vmem %s6, %s285
      %p287 = scmp.lt.s32.totalorder %s19, 1
      %s288 = scalar_select %p287, %s19, 1
      %s289 = smul.addr %s288, 4
      %s290 = smul.addr %s289, 8
      %s291 = scalar_lea.vmem %s7, %s290
      %v293 = vld [vmem:[%s0] sm:$0x3]
      %v294 = vld [vmem:[%s281] sm:$0xff]
      %296 = vst [vmem:[#allocation1] ss:$9 sm:$0xff] %v293
      %v297 = vld [vmem:[#allocation1] sm:$0xff]
      %v298 = vld [vmem:[#allocation1 + $0x9] sm:$0xff]
      %v299 = vpack.i.b16 %v297, %v297
      %v301 = vperm.slane %v299, 0
      %v302 = vpack.i.b16 %v298, %v298
      %v304 = vperm.slane %v302, 0
      %v305 = vunpack.c.l.bf16 %v294
      %v306 = vunpack.c.h.bf16 %v294
      %v307 = vunpack.c.l.bf16 %v301
      %v308 = vunpack.c.l.bf16 %v304
      %v311 = vrot.slane %v308, 4
      %vm312 = vcmask 1043456
      %v313 = vsel %vm312, %v307, %v311
      %314 = vrot.lane.b32.xlu0 %v313, 111
      %v315 = vpop.permute.xlu0 %314
      %v316 = vrot.slane %v315, 4
      %vm317 = vcmask 908288
      %v318 = vsel %vm317, %v316, %v315
      %v321 = vmul.f32 %v305, %v318
      %v322 = vmul.f32 %v306, %v316
      %325 = vst [vmem:[#allocation1] ss:$2 sm:$0xff] %v321
      %s326 = scalar_lea.vmem [#allocation1], 16
      %327 = vst [vmem:[%s326] ss:$2 sm:$0xff] %v322
      %v328 = vld.sshfl [vmem:[#allocation1] sm:$0xff pattern:$0x75316420]
      %v329 = vld.sshfl [vmem:[#allocation1 + $0x8] sm:$0xff pattern:$0x75316420]
      %v330 = vld.sshfl [vmem:[#allocation1 + $0x10] sm:$0xff pattern:$0x75316420]
      %v334 = vpack.c.bf16 %v328, %v328
      %v335 = vpack.c.bf16 %v329, %v329
      %v336 = vpack.c.bf16 %v330, %v330
      %v337 = vld [vmem:[%s2] sm:$0xf]
      %s338 = scalar_lea.vmem %s2, 4
      %v339 = vld [vmem:[%s338] sm:$0xf]
      %341 = vst [vmem:[#allocation1] ss:$4 sm:$0xff] %v294
      %v342 = vld.sshfl [vmem:[#allocation1] sm:$0xff pattern:$0x73625140]
      %v344 = vld.sshfl [vmem:[#allocation1 + $0x8] sm:$0xff pattern:$0x73625140]
      %v346 = vld.sshfl [vmem:[#allocation1 + $0x10] sm:$0xff pattern:$0x73625140]
      %348 = vrot.lane.b32.xlu0 %v342, 16
      %v349 = vpop.permute.xlu0 %348
      %350 = vrot.lane.b32.xlu0 %v344, 16
      %v351 = vpop.permute.xlu0 %350
      %352 = vrot.lane.b32.xlu0 %v346, 16
      %v353 = vpop.permute.xlu0 %352
      %vm354 = vcmask 130048
      %v355 = vsel %vm354, %v349, %v351
      %v356 = vsel %vm354, %v351, %v353
      %vm357 = vcmask 23552
      %v359 = vsel %vm357, %v339, 0
      %vm361 = vcmask 1040384
      %vm362 = vcmask 1041408
      %v363 = vsel %vm361, 4294967295, 65535
      %v364 = vsel %vm362, %v363, 0
      %v366 = vand.u32 %v355, %v364
      %v369 = vand.u32 %v356, %v364
      %371 = vmatpush.bf16.msra.mxu0 0
      %372 = vmatpush.bf16.msra.mxu0 0
      %373 = vmatpush.bf16.msra.mxu0 0
      %374 = vmatpush.bf16.msra.mxu0 0
      %375 = vmatpush.bf16.msra.mxu0 0
      %376 = vmatpush.bf16.msra.mxu0 0
      %377 = vmatpush.bf16.msra.mxu0 0
      %378 = vmatpush.bf16.msra.mxu0 %v366
      %379 = vmatmul.bf16.gmra.mxu0 %v359
      %v380 = vpop.f32.mrf.mxu0
      %v381 = vadd.f32 0.0, %v380
      %v382 = vpop.f32.mrf.mxu0
      %383 = vdwg.mxu0
      %384 = vmatpush.bf16.msra.mxu0 0
      %385 = vmatpush.bf16.msra.mxu0 0
      %386 = vmatpush.bf16.msra.mxu0 0
      %387 = vmatpush.bf16.msra.mxu0 0
      %388 = vmatpush.bf16.msra.mxu0 0
      %389 = vmatpush.bf16.msra.mxu0 0
      %390 = vmatpush.bf16.msra.mxu0 0
      %391 = vmatpush.bf16.msra.mxu0 %v369
      %392 = vmatmul.bf16.gmra.mxu0 %v359
      %v393 = vpop.f32.mrf.mxu0
      %v394 = vadd.f32 0.0, %v393
      %v395 = vpop.f32.mrf.mxu0
      %396 = vdwg.mxu0
      %400 = vrot.lane.b32.xlu0 %v334, 17
      %v401 = vpop.permute.xlu0 %400
      %402 = vrot.lane.b32.xlu0 %v335, 17
      %v403 = vpop.permute.xlu0 %402
      %404 = vrot.lane.b32.xlu0 %v336, 17
      %v405 = vpop.permute.xlu0 %404
      %vm406 = vcmask 138240
      %v407 = vsel %vm406, %v401, %v403
      %v408 = vsel %vm406, %v403, %v405
      %v410 = vsel %vm357, %v337, 0
      %v413 = vand.u32 %v407, %v364
      %v416 = vand.u32 %v408, %v364
      %418 = vmatpush.bf16.msra.mxu0 0
      %419 = vmatpush.bf16.msra.mxu0 0
      %420 = vmatpush.bf16.msra.mxu0 0
      %421 = vmatpush.bf16.msra.mxu0 0
      %422 = vmatpush.bf16.msra.mxu0 0
      %423 = vmatpush.bf16.msra.mxu0 0
      %424 = vmatpush.bf16.msra.mxu0 0
      %425 = vmatpush.bf16.msra.mxu0 %v413
      %426 = vmatmul.bf16.gmra.mxu0 %v410
      %v427 = vpop.f32.mrf.mxu0
      %v428 = vadd.f32 %v381, %v427
      %v429 = vpop.f32.mrf.mxu0
      %430 = vdwg.mxu0
      %431 = vmatpush.bf16.msra.mxu0 0
      %432 = vmatpush.bf16.msra.mxu0 0
      %433 = vmatpush.bf16.msra.mxu0 0
      %434 = vmatpush.bf16.msra.mxu0 0
      %435 = vmatpush.bf16.msra.mxu0 0
      %436 = vmatpush.bf16.msra.mxu0 0
      %437 = vmatpush.bf16.msra.mxu0 0
      %438 = vmatpush.bf16.msra.mxu0 %v416
      %439 = vmatmul.bf16.gmra.mxu0 %v410
      %v440 = vpop.f32.mrf.mxu0
      %v441 = vadd.f32 %v394, %v440
      %v442 = vpop.f32.mrf.mxu0
      %443 = vdwg.mxu0
      %444 = vst [vmem:[#allocation1] ss:$9 sm:$0xff] %v293
      %v445 = vld [vmem:[#allocation1] sm:$0xff]
      %v446 = vld [vmem:[#allocation1 + $0x9] sm:$0xff]
      %v447 = vshrl.u32 %v445, 16
      %v448 = vpack.i.b16 %v447, %v447
      %v450 = vperm.slane %v448, 0
      %v451 = vshrl.u32 %v446, 16
      %v452 = vpack.i.b16 %v451, %v451
      %v454 = vperm.slane %v452, 0
      %v455 = vunpack.c.l.bf16 %v450
      %v456 = vunpack.c.l.bf16 %v454
      %v459 = vrot.slane %v456, 4
      %v460 = vsel %vm312, %v455, %v459
      %461 = vrot.lane.b32.xlu0 %v460, 113
      %v462 = vpop.permute.xlu0 %461
      %v463 = vrot.slane %v462, 4
      %vm464 = vcmask 924672
      %v465 = vsel %vm464, %v463, %v462
      %v468 = vmul.f32 %v305, %v465
      %v469 = vmul.f32 %v306, %v463
      %472 = vst [vmem:[#allocation1] ss:$2 sm:$0xff] %v468
      %s473 = scalar_lea.vmem [#allocation1], 16
      %474 = vst [vmem:[%s473] ss:$2 sm:$0xff] %v469
      %v475 = vld.sshfl [vmem:[#allocation1] sm:$0xff pattern:$0x75316420]
      %v476 = vld.sshfl [vmem:[#allocation1 + $0x8] sm:$0xff pattern:$0x75316420]
      %v477 = vld.sshfl [vmem:[#allocation1 + $0x10] sm:$0xff pattern:$0x75316420]
      %v481 = vpack.c.bf16 %v475, %v475
      %v482 = vpack.c.bf16 %v476, %v476
      %v483 = vpack.c.bf16 %v477, %v477
      %s484 = scalar_lea.vmem %s2, 8
      %v485 = vld [vmem:[%s484] sm:$0xf]
      %489 = vrot.lane.b32.xlu0 %v481, 15
      %v490 = vpop.permute.xlu0 %489
      %491 = vrot.lane.b32.xlu0 %v482, 15
      %v492 = vpop.permute.xlu0 %491
      %493 = vrot.lane.b32.xlu0 %v483, 15
      %v494 = vpop.permute.xlu0 %493
      %vm495 = vcmask 121856
      %v496 = vsel %vm495, %v490, %v492
      %v497 = vsel %vm495, %v492, %v494
      %v499 = vsel %vm357, %v485, 0
      %v502 = vand.u32 %v496, %v364
      %v505 = vand.u32 %v497, %v364
      %507 = vmatpush.bf16.msra.mxu0 0
      %508 = vmatpush.bf16.msra.mxu0 0
      %509 = vmatpush.bf16.msra.mxu0 0
      %510 = vmatpush.bf16.msra.mxu0 0
      %511 = vmatpush.bf16.msra.mxu0 0
      %512 = vmatpush.bf16.msra.mxu0 0
      %513 = vmatpush.bf16.msra.mxu0 0
      %514 = vmatpush.bf16.msra.mxu0 %v502
      %515 = vmatmul.bf16.gmra.mxu0 %v499
      %v516 = vpop.f32.mrf.mxu0
      %v517 = vadd.f32 0.0, %v516
      %v518 = vpop.f32.mrf.mxu0
      %519 = vdwg.mxu0
      %520 = vmatpush.bf16.msra.mxu0 0
      %521 = vmatpush.bf16.msra.mxu0 0
      %522 = vmatpush.bf16.msra.mxu0 0
      %523 = vmatpush.bf16.msra.mxu0 0
      %524 = vmatpush.bf16.msra.mxu0 0
      %525 = vmatpush.bf16.msra.mxu0 0
      %526 = vmatpush.bf16.msra.mxu0 0
      %527 = vmatpush.bf16.msra.mxu0 %v505
      %528 = vmatmul.bf16.gmra.mxu0 %v499
      %v529 = vpop.f32.mrf.mxu0
      %v530 = vadd.f32 0.0, %v529
      %v531 = vpop.f32.mrf.mxu0
      %532 = vdwg.mxu0
      %v533 = vadd.f32 %v428, %v517
      %v534 = vadd.f32 %v441, %v530
      %535 = vrot.lane.b32.xlu0 %v313, 127
      %v536 = vpop.permute.xlu0 %535
      %v537 = vrot.slane %v536, 4
      %vm538 = vcmask 1039360
      %v539 = vsel %vm538, %v537, %v536
      %v542 = vmul.f32 %v305, %v539
      %v543 = vmul.f32 %v306, %v537
      %546 = vst [vmem:[#allocation1] ss:$2 sm:$0xff] %v542
      %s547 = scalar_lea.vmem [#allocation1], 16
      %548 = vst [vmem:[%s547] ss:$2 sm:$0xff] %v543
      %v549 = vld.sshfl [vmem:[#allocation1] sm:$0xff pattern:$0x75316420]
      %v550 = vld.sshfl [vmem:[#allocation1 + $0x8] sm:$0xff pattern:$0x75316420]
      %v551 = vld.sshfl [vmem:[#allocation1 + $0x10] sm:$0xff pattern:$0x75316420]
      %v555 = vpack.c.bf16 %v549, %v549
      %v556 = vpack.c.bf16 %v550, %v550
      %v557 = vpack.c.bf16 %v551, %v551
      %s558 = scalar_lea.vmem %s2, 12
      %v559 = vld [vmem:[%s558] sm:$0xf]
      %563 = vrot.lane.b32.xlu0 %v555, 1
      %v564 = vpop.permute.xlu0 %563
      %565 = vrot.lane.b32.xlu0 %v556, 1
      %v566 = vpop.permute.xlu0 %565
      %567 = vrot.lane.b32.xlu0 %v557, 1
      %v568 = vpop.permute.xlu0 %567
      %vm569 = vcmask 7168
      %v570 = vsel %vm569, %v564, %v566
      %v571 = vsel %vm569, %v566, %v568
      %v573 = vsel %vm357, %v559, 0
      %v576 = vand.u32 %v570, %v364
      %v579 = vand.u32 %v571, %v364
      %581 = vmatpush.bf16.msra.mxu0 0
      %582 = vmatpush.bf16.msra.mxu0 0
      %583 = vmatpush.bf16.msra.mxu0 0
      %584 = vmatpush.bf16.msra.mxu0 0
      %585 = vmatpush.bf16.msra.mxu0 0
      %586 = vmatpush.bf16.msra.mxu0 0
      %587 = vmatpush.bf16.msra.mxu0 0
      %588 = vmatpush.bf16.msra.mxu0 %v576
      %589 = vmatmul.bf16.gmra.mxu0 %v573
      %v590 = vpop.f32.mrf.mxu0
      %v591 = vadd.f32 0.0, %v590
      %v592 = vpop.f32.mrf.mxu0
      %593 = vdwg.mxu0
      %594 = vmatpush.bf16.msra.mxu0 0
      %595 = vmatpush.bf16.msra.mxu0 0
      %596 = vmatpush.bf16.msra.mxu0 0
      %597 = vmatpush.bf16.msra.mxu0 0
      %598 = vmatpush.bf16.msra.mxu0 0
      %599 = vmatpush.bf16.msra.mxu0 0
      %600 = vmatpush.bf16.msra.mxu0 0
      %601 = vmatpush.bf16.msra.mxu0 %v579
      %602 = vmatmul.bf16.gmra.mxu0 %v573
      %v603 = vpop.f32.mrf.mxu0
      %v604 = vadd.f32 0.0, %v603
      %v605 = vpop.f32.mrf.mxu0
      %606 = vdwg.mxu0
      %v607 = vadd.f32 %v533, %v591
      %v608 = vadd.f32 %v534, %v604
      %s609 = scalar_lea.vmem %s2, 16
      %v610 = vld [vmem:[%s609] sm:$0xf]
      %611 = vst [vmem:[#allocation1] ss:$4 sm:$0xff] %v294
      %v612 = vld.sshfl [vmem:[#allocation1 + $0x8] sm:$0xff pattern:$0x73625140]
      %v613 = vld.sshfl [vmem:[#allocation1 + $0x10] sm:$0xff pattern:$0x73625140]
      %v615 = vsel %vm357, %v610, 0
      %v617 = vand.u32 %v612, %v364
      %v619 = vand.u32 %v613, %v364
      %621 = vmatpush.bf16.msra.mxu0 0
      %622 = vmatpush.bf16.msra.mxu0 0
      %623 = vmatpush.bf16.msra.mxu0 0
      %624 = vmatpush.bf16.msra.mxu0 0
      %625 = vmatpush.bf16.msra.mxu0 0
      %626 = vmatpush.bf16.msra.mxu0 0
      %627 = vmatpush.bf16.msra.mxu0 0
      %628 = vmatpush.bf16.msra.mxu0 %v617
      %629 = vmatmul.bf16.gmra.mxu0 %v615
      %v630 = vpop.f32.mrf.mxu0
      %v631 = vadd.f32 0.0, %v630
      %v632 = vpop.f32.mrf.mxu0
      %633 = vdwg.mxu0
      %634 = vmatpush.bf16.msra.mxu0 0
      %635 = vmatpush.bf16.msra.mxu0 0
      %636 = vmatpush.bf16.msra.mxu0 0
      %637 = vmatpush.bf16.msra.mxu0 0
      %638 = vmatpush.bf16.msra.mxu0 0
      %639 = vmatpush.bf16.msra.mxu0 0
      %640 = vmatpush.bf16.msra.mxu0 0
      %641 = vmatpush.bf16.msra.mxu0 %v619
      %642 = vmatmul.bf16.gmra.mxu0 %v615
      %v643 = vpop.f32.mrf.mxu0
      %v644 = vadd.f32 0.0, %v643
      %v645 = vpop.f32.mrf.mxu0
      %646 = vdwg.mxu0
      %v647 = vadd.f32 %v607, %v631
      %v648 = vadd.f32 %v608, %v644
      %650 = vrot.lane.b32.xlu0 %v294, 127
      %v651 = vpop.permute.xlu0 %650
      %v652 = vrot.slane %v651, 2
      %v653 = vrot.slane %v651, 4
      %vm654 = vcmask 1039360
      %v655 = vsel %vm654, %v652, %v653
      %v657 = vunpack.c.l.bf16 %v655
      %v659 = vmul.f32 %v657, %v460
      %661 = vst [vmem:[#allocation1] ss:$2 sm:$0xff] %v659
      %v662 = vld.sshfl [vmem:[#allocation1] sm:$0xff pattern:$0x75316420]
      %v663 = vld.sshfl [vmem:[#allocation1 + $0x8] sm:$0xff pattern:$0x75316420]
      %v666 = vpack.c.bf16 %v662, %v662
      %v667 = vpack.c.bf16 %v663, %v663
      %s668 = scalar_lea.vmem %s2, 20
      %v669 = vld [vmem:[%s668] sm:$0xf]
      %v671 = vsel %vm357, %v669, 0
      %v674 = vand.u32 %v666, %v364
      %v677 = vand.u32 %v667, %v364
      %679 = vmatpush.bf16.msra.mxu0 0
      %680 = vmatpush.bf16.msra.mxu0 0
      %681 = vmatpush.bf16.msra.mxu0 0
      %682 = vmatpush.bf16.msra.mxu0 0
      %683 = vmatpush.bf16.msra.mxu0 0
      %684 = vmatpush.bf16.msra.mxu0 0
      %685 = vmatpush.bf16.msra.mxu0 0
      %686 = vmatpush.bf16.msra.mxu0 %v674
      %687 = vmatmul.bf16.gmra.mxu0 %v671
      %v688 = vpop.f32.mrf.mxu0
      %v689 = vadd.f32 0.0, %v688
      %v690 = vpop.f32.mrf.mxu0
      %691 = vdwg.mxu0
      %692 = vmatpush.bf16.msra.mxu0 0
      %693 = vmatpush.bf16.msra.mxu0 0
      %694 = vmatpush.bf16.msra.mxu0 0
      %695 = vmatpush.bf16.msra.mxu0 0
      %696 = vmatpush.bf16.msra.mxu0 0
      %697 = vmatpush.bf16.msra.mxu0 0
      %698 = vmatpush.bf16.msra.mxu0 0
      %699 = vmatpush.bf16.msra.mxu0 %v677
      %700 = vmatmul.bf16.gmra.mxu0 %v671
      %v701 = vpop.f32.mrf.mxu0
      %v702 = vadd.f32 0.0, %v701
      %v703 = vpop.f32.mrf.mxu0
      %704 = vdwg.mxu0
      %v705 = vadd.f32 %v647, %v689
      %v706 = vadd.f32 %v648, %v702
      %707 = vrot.lane.b32.xlu0 %v294, 113
      %v708 = vpop.permute.xlu0 %707
      %v709 = vrot.slane %v708, 2
      %v710 = vrot.slane %v708, 4
      %vm711 = vcmask 924672
      %v712 = vsel %vm711, %v709, %v710
      %v714 = vunpack.c.l.bf16 %v712
      %v716 = vmul.f32 %v714, %v313
      %718 = vst [vmem:[#allocation1] ss:$2 sm:$0xff] %v716
      %v719 = vld.sshfl [vmem:[#allocation1] sm:$0xff pattern:$0x75316420]
      %v720 = vld.sshfl [vmem:[#allocation1 + $0x8] sm:$0xff pattern:$0x75316420]
      %v723 = vpack.c.bf16 %v719, %v719
      %v724 = vpack.c.bf16 %v720, %v720
      %s725 = scalar_lea.vmem %s2, 24
      %v726 = vld [vmem:[%s725] sm:$0xf]
      %v728 = vsel %vm357, %v726, 0
      %v731 = vand.u32 %v723, %v364
      %v734 = vand.u32 %v724, %v364
      %736 = vmatpush.bf16.msra.mxu0 0
      %737 = vmatpush.bf16.msra.mxu0 0
      %738 = vmatpush.bf16.msra.mxu0 0
      %739 = vmatpush.bf16.msra.mxu0 0
      %740 = vmatpush.bf16.msra.mxu0 0
      %741 = vmatpush.bf16.msra.mxu0 0
      %742 = vmatpush.bf16.msra.mxu0 0
      %743 = vmatpush.bf16.msra.mxu0 %v731
      %744 = vmatmul.bf16.gmra.mxu0 %v728
      %v745 = vpop.f32.mrf.mxu0
      %v746 = vadd.f32 0.0, %v745
      %v747 = vpop.f32.mrf.mxu0
      %748 = vdwg.mxu0
      %749 = vmatpush.bf16.msra.mxu0 0
      %750 = vmatpush.bf16.msra.mxu0 0
      %751 = vmatpush.bf16.msra.mxu0 0
      %752 = vmatpush.bf16.msra.mxu0 0
      %753 = vmatpush.bf16.msra.mxu0 0
      %754 = vmatpush.bf16.msra.mxu0 0
      %755 = vmatpush.bf16.msra.mxu0 0
      %756 = vmatpush.bf16.msra.mxu0 %v734
      %757 = vmatmul.bf16.gmra.mxu0 %v728
      %v758 = vpop.f32.mrf.mxu0
      %v759 = vadd.f32 0.0, %v758
      %v760 = vpop.f32.mrf.mxu0
      %761 = vdwg.mxu0
      %v762 = vadd.f32 %v705, %v746
      %v763 = vadd.f32 %v706, %v759
      %s764 = scalar_lea.vmem %s2, 28
      %v765 = vld [vmem:[%s764] sm:$0xf]
      %766 = vst [vmem:[#allocation1] ss:$4 sm:$0xff] %v294
      %v767 = vld.sshfl [vmem:[#allocation1 + $0x8] sm:$0xff pattern:$0x73625140]
      %v769 = vld.sshfl [vmem:[#allocation1 + $0x10] sm:$0xff pattern:$0x73625140]
      %v771 = vld.sshfl [vmem:[#allocation1 + $0x18] sm:$0xff pattern:$0x73625140]
      %773 = vrot.lane.b32.xlu0 %v767, 112
      %v774 = vpop.permute.xlu0 %773
      %775 = vrot.lane.b32.xlu0 %v769, 112
      %v776 = vpop.permute.xlu0 %775
      %777 = vrot.lane.b32.xlu0 %v771, 112
      %v778 = vpop.permute.xlu0 %777
      %vm779 = vcmask 916480
      %v780 = vsel %vm779, %v774, %v776
      %v781 = vsel %vm779, %v776, %v778
      %v783 = vsel %vm357, %v765, 0
      %v786 = vand.u32 %v780, %v364
      %v789 = vand.u32 %v781, %v364
      %791 = vmatpush.bf16.msra.mxu0 0
      %792 = vmatpush.bf16.msra.mxu0 0
      %793 = vmatpush.bf16.msra.mxu0 0
      %794 = vmatpush.bf16.msra.mxu0 0
      %795 = vmatpush.bf16.msra.mxu0 0
      %796 = vmatpush.bf16.msra.mxu0 0
      %797 = vmatpush.bf16.msra.mxu0 0
      %798 = vmatpush.bf16.msra.mxu0 %v786
      %799 = vmatmul.bf16.gmra.mxu0 %v783
      %v800 = vpop.f32.mrf.mxu0
      %v801 = vadd.f32 0.0, %v800
      %v802 = vpop.f32.mrf.mxu0
      %803 = vdwg.mxu0
      %804 = vmatpush.bf16.msra.mxu0 0
      %805 = vmatpush.bf16.msra.mxu0 0
      %806 = vmatpush.bf16.msra.mxu0 0
      %807 = vmatpush.bf16.msra.mxu0 0
      %808 = vmatpush.bf16.msra.mxu0 0
      %809 = vmatpush.bf16.msra.mxu0 0
      %810 = vmatpush.bf16.msra.mxu0 0
      %811 = vmatpush.bf16.msra.mxu0 %v789
      %812 = vmatmul.bf16.gmra.mxu0 %v783
      %v813 = vpop.f32.mrf.mxu0
      %v814 = vadd.f32 0.0, %v813
      %v815 = vpop.f32.mrf.mxu0
      %816 = vdwg.mxu0
      %v817 = vadd.f32 %v762, %v801
      %v818 = vadd.f32 %v763, %v814
      %819 = vrot.lane.b32.xlu0 %v294, 111
      %v820 = vpop.permute.xlu0 %819
      %v821 = vrot.slane %v820, 2
      %v822 = vrot.slane %v820, 4
      %vm823 = vcmask 908288
      %v824 = vsel %vm823, %v821, %v822
      %v826 = vunpack.c.l.bf16 %v824
      %v827 = vmul.f32 %v826, %v460
      %829 = vst [vmem:[#allocation1] ss:$2 sm:$0xff] %v827
      %v830 = vld.sshfl [vmem:[#allocation1] sm:$0xff pattern:$0x75316420]
      %v831 = vld.sshfl [vmem:[#allocation1 + $0x8] sm:$0xff pattern:$0x75316420]
      %v834 = vpack.c.bf16 %v830, %v830
      %v835 = vpack.c.bf16 %v831, %v831
      %s836 = scalar_lea.vmem %s2, 32
      %v837 = vld [vmem:[%s836] sm:$0xf]
      %v839 = vsel %vm357, %v837, 0
      %v842 = vand.u32 %v834, %v364
      %v845 = vand.u32 %v835, %v364
      %847 = vmatpush.bf16.msra.mxu0 0
      %848 = vmatpush.bf16.msra.mxu0 0
      %849 = vmatpush.bf16.msra.mxu0 0
      %850 = vmatpush.bf16.msra.mxu0 0
      %851 = vmatpush.bf16.msra.mxu0 0
      %852 = vmatpush.bf16.msra.mxu0 0
      %853 = vmatpush.bf16.msra.mxu0 0
      %854 = vmatpush.bf16.msra.mxu0 %v842
      %855 = vmatmul.bf16.gmra.mxu0 %v839
      %v856 = vpop.f32.mrf.mxu0
      %v857 = vadd.f32 0.0, %v856
      %v858 = vpop.f32.mrf.mxu0
      %859 = vdwg.mxu0
      %860 = vmatpush.bf16.msra.mxu0 0
      %861 = vmatpush.bf16.msra.mxu0 0
      %862 = vmatpush.bf16.msra.mxu0 0
      %863 = vmatpush.bf16.msra.mxu0 0
      %864 = vmatpush.bf16.msra.mxu0 0
      %865 = vmatpush.bf16.msra.mxu0 0
      %866 = vmatpush.bf16.msra.mxu0 0
      %867 = vmatpush.bf16.msra.mxu0 %v845
      %868 = vmatmul.bf16.gmra.mxu0 %v839
      %v869 = vpop.f32.mrf.mxu0
      %v870 = vadd.f32 0.0, %v869
      %v871 = vpop.f32.mrf.mxu0
      %872 = vdwg.mxu0
      %v873 = vadd.f32 %v817, %v857
      %v874 = vadd.f32 %v818, %v870
      %v875 = vld [vmem:[%s3] sm:$0xff]
      %877 = vset.pattern.permute.xlu0 0
      %878 = vperm.xlu0 %877, %v875
      %v879 = vpop.permute.xlu0 %878
      %v881 = vadd.f32 %v873, %v879
      %v882 = vadd.f32 %v874, %v879
      %883 = vst [vmem:[%s286] sm:$0xff] %v881
      %884 = vst [vmem:[%s286 + $0x8] sm:$0xff] %v882
      %v885 = vmax.f32 %v881, 0.0
      %v886 = vmax.f32 %v882, 0.0
      %v887 = vpack.c.bf16 %v886, %v885
      %v889 = vunpack.c.l.b16 %v887
      %v890 = vunpack.c.h.b16 %v887
      %v891 = vpack.c.b16 %v889, %v889
      %v892 = vpack.c.b16 %v890, %v890
      %895 = vst [vmem:[#allocation1] ss:$9 sm:$0xff] %v293
      %v896 = vld [vmem:[#allocation1] sm:$0xff]
      %v897 = vld [vmem:[#allocation1 + $0x9] sm:$0xff]
      %v898 = vpack.i.b16 %v896, %v896
      %v900 = vperm.slane %v898, 0
      %v901 = vpack.i.b16 %v897, %v897
      %v903 = vperm.slane %v901, 0
      %v904 = vunpack.c.l.bf16 0
      %v905 = vunpack.c.l.bf16 %v891
      %v906 = vunpack.c.l.bf16 %v892
      %v907 = vunpack.c.l.bf16 %v900
      %v908 = vunpack.c.l.bf16 %v903
      %911 = vrot.lane.b32.xlu0 %v907, 111
      %v912 = vpop.permute.xlu0 %911
      %913 = vrot.lane.b32.xlu0 %v908, 111
      %v914 = vpop.permute.xlu0 %913
      %v915 = vsel %vm317, %v912, %v914
      %v919 = vmul.f32 %v904, %v912
      %v920 = vmul.f32 %v905, %v915
      %v921 = vmul.f32 %v906, %v914
      %v922 = vpack.c.bf16 %v919, %v919
      %v923 = vpack.c.bf16 %v920, %v920
      %v924 = vpack.c.bf16 %v921, %v921
      %v925 = vld [vmem:[%s4] sm:$0xf]
      %v926 = vld [vmem:[%s4 + $0x4] sm:$0xf]
      %s927 = scalar_lea.vmem %s4, 8
      %v928 = vld [vmem:[%s927] sm:$0xf]
      %v929 = vld [vmem:[%s927 + $0x4] sm:$0xf]
      %v932 = vunpack.c.l.b16 %v928
      %v933 = vunpack.c.l.b16 %v929
      %v934 = vpack.c.b16 %v933, %v932
      %936 = vrot.lane.b32.xlu0 0, 16
      %v937 = vpop.permute.xlu0 %936
      %938 = vrot.lane.b32.xlu0 %v891, 16
      %v939 = vpop.permute.xlu0 %938
      %940 = vrot.lane.b32.xlu0 %v892, 16
      %v941 = vpop.permute.xlu0 %940
      %v942 = vsel %vm354, %v937, %v939
      %v943 = vsel %vm354, %v939, %v941
      %vm944 = vcmask 64512
      %v946 = vsel %vm944, %v934, 0
      %v949 = vsel %vm312, %v942, 0
      %v952 = vsel %vm312, %v943, 0
      %954 = vmatpush.bf16.msra.mxu0 0
      %955 = vmatpush.bf16.msra.mxu0 0
      %956 = vmatpush.bf16.msra.mxu0 0
      %957 = vmatpush.bf16.msra.mxu0 0
      %958 = vmatpush.bf16.msra.mxu0 0
      %959 = vmatpush.bf16.msra.mxu0 0
      %960 = vmatpush.bf16.msra.mxu0 0
      %961 = vmatpush.bf16.msra.mxu0 %v949
      %962 = vmatmul.bf16.gmra.mxu0 %v946
      %v963 = vpop.f32.mrf.mxu0
      %v964 = vadd.f32 0.0, %v963
      %v965 = vpop.f32.mrf.mxu0
      %v966 = vadd.f32 0.0, %v965
      %967 = vdwg.mxu0
      %968 = vmatpush.bf16.msra.mxu0 0
      %969 = vmatpush.bf16.msra.mxu0 0
      %970 = vmatpush.bf16.msra.mxu0 0
      %971 = vmatpush.bf16.msra.mxu0 0
      %972 = vmatpush.bf16.msra.mxu0 0
      %973 = vmatpush.bf16.msra.mxu0 0
      %974 = vmatpush.bf16.msra.mxu0 0
      %975 = vmatpush.bf16.msra.mxu0 %v952
      %976 = vmatmul.bf16.gmra.mxu0 %v946
      %v977 = vpop.f32.mrf.mxu0
      %v978 = vadd.f32 0.0, %v977
      %v979 = vpop.f32.mrf.mxu0
      %v980 = vadd.f32 0.0, %v979
      %981 = vdwg.mxu0
      %v984 = vunpack.c.l.b16 %v925
      %v985 = vunpack.c.l.b16 %v926
      %v986 = vpack.c.b16 %v985, %v984
      %990 = vrot.lane.b32.xlu0 %v922, 17
      %v991 = vpop.permute.xlu0 %990
      %992 = vrot.lane.b32.xlu0 %v923, 17
      %v993 = vpop.permute.xlu0 %992
      %994 = vrot.lane.b32.xlu0 %v924, 17
      %v995 = vpop.permute.xlu0 %994
      %v996 = vsel %vm406, %v991, %v993
      %v997 = vsel %vm406, %v993, %v995
      %v999 = vsel %vm944, %v986, 0
      %v1002 = vsel %vm312, %v996, 0
      %v1005 = vsel %vm312, %v997, 0
      %1007 = vmatpush.bf16.msra.mxu0 0
      %1008 = vmatpush.bf16.msra.mxu0 0
      %1009 = vmatpush.bf16.msra.mxu0 0
      %1010 = vmatpush.bf16.msra.mxu0 0
      %1011 = vmatpush.bf16.msra.mxu0 0
      %1012 = vmatpush.bf16.msra.mxu0 0
      %1013 = vmatpush.bf16.msra.mxu0 0
      %1014 = vmatpush.bf16.msra.mxu0 %v1002
      %1015 = vmatmul.bf16.gmra.mxu0 %v999
      %v1016 = vpop.f32.mrf.mxu0
      %v1017 = vadd.f32 %v964, %v1016
      %v1018 = vpop.f32.mrf.mxu0
      %v1019 = vadd.f32 %v966, %v1018
      %1020 = vdwg.mxu0
      %1021 = vmatpush.bf16.msra.mxu0 0
      %1022 = vmatpush.bf16.msra.mxu0 0
      %1023 = vmatpush.bf16.msra.mxu0 0
      %1024 = vmatpush.bf16.msra.mxu0 0
      %1025 = vmatpush.bf16.msra.mxu0 0
      %1026 = vmatpush.bf16.msra.mxu0 0
      %1027 = vmatpush.bf16.msra.mxu0 0
      %1028 = vmatpush.bf16.msra.mxu0 %v1005
      %1029 = vmatmul.bf16.gmra.mxu0 %v999
      %v1030 = vpop.f32.mrf.mxu0
      %v1031 = vadd.f32 %v978, %v1030
      %v1032 = vpop.f32.mrf.mxu0
      %v1033 = vadd.f32 %v980, %v1032
      %1034 = vdwg.mxu0
      %1035 = vst [vmem:[#allocation1] ss:$9 sm:$0xff] %v293
      %v1036 = vld [vmem:[#allocation1] sm:$0xff]
      %v1037 = vld [vmem:[#allocation1 + $0x9] sm:$0xff]
      %v1038 = vshrl.u32 %v1036, 16
      %v1039 = vpack.i.b16 %v1038, %v1038
      %v1041 = vperm.slane %v1039, 0
      %v1042 = vshrl.u32 %v1037, 16
      %v1043 = vpack.i.b16 %v1042, %v1042
      %v1045 = vperm.slane %v1043, 0
      %v1046 = vunpack.c.l.bf16 %v1041
      %v1047 = vunpack.c.l.bf16 %v1045
      %1050 = vrot.lane.b32.xlu0 %v1046, 113
      %v1051 = vpop.permute.xlu0 %1050
      %1052 = vrot.lane.b32.xlu0 %v1047, 113
      %v1053 = vpop.permute.xlu0 %1052
      %v1054 = vsel %vm464, %v1051, %v1053
      %v1058 = vmul.f32 %v904, %v1051
      %v1059 = vmul.f32 %v905, %v1054
      %v1060 = vmul.f32 %v906, %v1053
      %v1061 = vpack.c.bf16 %v1058, %v1058
      %v1062 = vpack.c.bf16 %v1059, %v1059
      %v1063 = vpack.c.bf16 %v1060, %v1060
      %s1064 = scalar_lea.vmem %s4, 16
      %v1065 = vld [vmem:[%s1064] sm:$0xf]
      %v1066 = vld [vmem:[%s1064 + $0x4] sm:$0xf]
      %v1069 = vunpack.c.l.b16 %v1065
      %v1070 = vunpack.c.l.b16 %v1066
      %v1071 = vpack.c.b16 %v1070, %v1069
      %1075 = vrot.lane.b32.xlu0 %v1061, 15
      %v1076 = vpop.permute.xlu0 %1075
      %1077 = vrot.lane.b32.xlu0 %v1062, 15
      %v1078 = vpop.permute.xlu0 %1077
      %1079 = vrot.lane.b32.xlu0 %v1063, 15
      %v1080 = vpop.permute.xlu0 %1079
      %v1081 = vsel %vm495, %v1076, %v1078
      %v1082 = vsel %vm495, %v1078, %v1080
      %v1084 = vsel %vm944, %v1071, 0
      %v1087 = vsel %vm312, %v1081, 0
      %v1090 = vsel %vm312, %v1082, 0
      %1092 = vmatpush.bf16.msra.mxu0 0
      %1093 = vmatpush.bf16.msra.mxu0 0
      %1094 = vmatpush.bf16.msra.mxu0 0
      %1095 = vmatpush.bf16.msra.mxu0 0
      %1096 = vmatpush.bf16.msra.mxu0 0
      %1097 = vmatpush.bf16.msra.mxu0 0
      %1098 = vmatpush.bf16.msra.mxu0 0
      %1099 = vmatpush.bf16.msra.mxu0 %v1087
      %1100 = vmatmul.bf16.gmra.mxu0 %v1084
      %v1101 = vpop.f32.mrf.mxu0
      %v1102 = vadd.f32 0.0, %v1101
      %v1103 = vpop.f32.mrf.mxu0
      %v1104 = vadd.f32 0.0, %v1103
      %1105 = vdwg.mxu0
      %1106 = vmatpush.bf16.msra.mxu0 0
      %1107 = vmatpush.bf16.msra.mxu0 0
      %1108 = vmatpush.bf16.msra.mxu0 0
      %1109 = vmatpush.bf16.msra.mxu0 0
      %1110 = vmatpush.bf16.msra.mxu0 0
      %1111 = vmatpush.bf16.msra.mxu0 0
      %1112 = vmatpush.bf16.msra.mxu0 0
      %1113 = vmatpush.bf16.msra.mxu0 %v1090
      %1114 = vmatmul.bf16.gmra.mxu0 %v1084
      %v1115 = vpop.f32.mrf.mxu0
      %v1116 = vadd.f32 0.0, %v1115
      %v1117 = vpop.f32.mrf.mxu0
      %v1118 = vadd.f32 0.0, %v1117
      %1119 = vdwg.mxu0
      %v1120 = vadd.f32 %v1017, %v1102
      %v1121 = vadd.f32 %v1031, %v1116
      %v1122 = vadd.f32 %v1019, %v1104
      %v1123 = vadd.f32 %v1033, %v1118
      %1124 = vrot.lane.b32.xlu0 %v907, 127
      %v1125 = vpop.permute.xlu0 %1124
      %1126 = vrot.lane.b32.xlu0 %v908, 127
      %v1127 = vpop.permute.xlu0 %1126
      %v1128 = vsel %vm538, %v1125, %v1127
      %v1132 = vmul.f32 %v904, %v1125
      %v1133 = vmul.f32 %v905, %v1128
      %v1134 = vmul.f32 %v906, %v1127
      %v1135 = vpack.c.bf16 %v1132, %v1132
      %v1136 = vpack.c.bf16 %v1133, %v1133
      %v1137 = vpack.c.bf16 %v1134, %v1134
      %s1138 = scalar_lea.vmem %s4, 24
      %v1139 = vld [vmem:[%s1138] sm:$0xf]
      %v1140 = vld [vmem:[%s1138 + $0x4] sm:$0xf]
      %v1143 = vunpack.c.l.b16 %v1139
      %v1144 = vunpack.c.l.b16 %v1140
      %v1145 = vpack.c.b16 %v1144, %v1143
      %1149 = vrot.lane.b32.xlu0 %v1135, 1
      %v1150 = vpop.permute.xlu0 %1149
      %1151 = vrot.lane.b32.xlu0 %v1136, 1
      %v1152 = vpop.permute.xlu0 %1151
      %1153 = vrot.lane.b32.xlu0 %v1137, 1
      %v1154 = vpop.permute.xlu0 %1153
      %v1155 = vsel %vm569, %v1150, %v1152
      %v1156 = vsel %vm569, %v1152, %v1154
      %v1158 = vsel %vm944, %v1145, 0
      %v1161 = vsel %vm312, %v1155, 0
      %v1164 = vsel %vm312, %v1156, 0
      %1166 = vmatpush.bf16.msra.mxu0 0
      %1167 = vmatpush.bf16.msra.mxu0 0
      %1168 = vmatpush.bf16.msra.mxu0 0
      %1169 = vmatpush.bf16.msra.mxu0 0
      %1170 = vmatpush.bf16.msra.mxu0 0
      %1171 = vmatpush.bf16.msra.mxu0 0
      %1172 = vmatpush.bf16.msra.mxu0 0
      %1173 = vmatpush.bf16.msra.mxu0 %v1161
      %1174 = vmatmul.bf16.gmra.mxu0 %v1158
      %v1175 = vpop.f32.mrf.mxu0
      %v1176 = vadd.f32 0.0, %v1175
      %v1177 = vpop.f32.mrf.mxu0
      %v1178 = vadd.f32 0.0, %v1177
      %1179 = vdwg.mxu0
      %1180 = vmatpush.bf16.msra.mxu0 0
      %1181 = vmatpush.bf16.msra.mxu0 0
      %1182 = vmatpush.bf16.msra.mxu0 0
      %1183 = vmatpush.bf16.msra.mxu0 0
      %1184 = vmatpush.bf16.msra.mxu0 0
      %1185 = vmatpush.bf16.msra.mxu0 0
      %1186 = vmatpush.bf16.msra.mxu0 0
      %1187 = vmatpush.bf16.msra.mxu0 %v1164
      %1188 = vmatmul.bf16.gmra.mxu0 %v1158
      %v1189 = vpop.f32.mrf.mxu0
      %v1190 = vadd.f32 0.0, %v1189
      %v1191 = vpop.f32.mrf.mxu0
      %v1192 = vadd.f32 0.0, %v1191
      %1193 = vdwg.mxu0
      %v1194 = vadd.f32 %v1120, %v1176
      %v1195 = vadd.f32 %v1121, %v1190
      %v1196 = vadd.f32 %v1122, %v1178
      %v1197 = vadd.f32 %v1123, %v1192
      %s1198 = scalar_lea.vmem %s4, 32
      %v1199 = vld [vmem:[%s1198] sm:$0xf]
      %v1200 = vld [vmem:[%s1198 + $0x4] sm:$0xf]
      %v1203 = vunpack.c.l.b16 %v1199
      %v1204 = vunpack.c.l.b16 %v1200
      %v1205 = vpack.c.b16 %v1204, %v1203
      %v1207 = vsel %vm944, %v1205, 0
      %v1210 = vsel %vm312, %v891, 0
      %v1213 = vsel %vm312, %v892, 0
      %1215 = vmatpush.bf16.msra.mxu0 0
      %1216 = vmatpush.bf16.msra.mxu0 0
      %1217 = vmatpush.bf16.msra.mxu0 0
      %1218 = vmatpush.bf16.msra.mxu0 0
      %1219 = vmatpush.bf16.msra.mxu0 0
      %1220 = vmatpush.bf16.msra.mxu0 0
      %1221 = vmatpush.bf16.msra.mxu0 0
      %1222 = vmatpush.bf16.msra.mxu0 %v1210
      %1223 = vmatmul.bf16.gmra.mxu0 %v1207
      %v1224 = vpop.f32.mrf.mxu0
      %v1225 = vadd.f32 0.0, %v1224
      %v1226 = vpop.f32.mrf.mxu0
      %v1227 = vadd.f32 0.0, %v1226
      %1228 = vdwg.mxu0
      %1229 = vmatpush.bf16.msra.mxu0 0
      %1230 = vmatpush.bf16.msra.mxu0 0
      %1231 = vmatpush.bf16.msra.mxu0 0
      %1232 = vmatpush.bf16.msra.mxu0 0
      %1233 = vmatpush.bf16.msra.mxu0 0
      %1234 = vmatpush.bf16.msra.mxu0 0
      %1235 = vmatpush.bf16.msra.mxu0 0
      %1236 = vmatpush.bf16.msra.mxu0 %v1213
      %1237 = vmatmul.bf16.gmra.mxu0 %v1207
      %v1238 = vpop.f32.mrf.mxu0
      %v1239 = vadd.f32 0.0, %v1238
      %v1240 = vpop.f32.mrf.mxu0
      %v1241 = vadd.f32 0.0, %v1240
      %1242 = vdwg.mxu0
      %v1243 = vadd.f32 %v1194, %v1225
      %v1244 = vadd.f32 %v1195, %v1239
      %v1245 = vadd.f32 %v1196, %v1227
      %v1246 = vadd.f32 %v1197, %v1241
      %1247 = vrot.lane.b32.xlu0 %v1046, 1
      %v1248 = vpop.permute.xlu0 %1247
      %1249 = vrot.lane.b32.xlu0 %v1047, 1
      %v1250 = vpop.permute.xlu0 %1249
      %vm1251 = vcmask 7168
      %v1252 = vsel %vm1251, %v1248, %v1250
      %v1256 = vmul.f32 %v905, %v1248
      %v1257 = vmul.f32 %v906, %v1252
      %v1258 = vmul.f32 %v904, %v1250
      %v1259 = vpack.c.bf16 %v1256, %v1256
      %v1260 = vpack.c.bf16 %v1257, %v1257
      %v1261 = vpack.c.bf16 %v1258, %v1258
      %s1262 = scalar_lea.vmem %s4, 40
      %v1263 = vld [vmem:[%s1262] sm:$0xf]
      %v1264 = vld [vmem:[%s1262 + $0x4] sm:$0xf]
      %v1267 = vunpack.c.l.b16 %v1263
      %v1268 = vunpack.c.l.b16 %v1264
      %v1269 = vpack.c.b16 %v1268, %v1267
      %1273 = vrot.lane.b32.xlu0 %v1259, 127
      %v1274 = vpop.permute.xlu0 %1273
      %1275 = vrot.lane.b32.xlu0 %v1260, 127
      %v1276 = vpop.permute.xlu0 %1275
      %1277 = vrot.lane.b32.xlu0 %v1261, 127
      %v1278 = vpop.permute.xlu0 %1277
      %v1279 = vsel %vm654, %v1274, %v1276
      %v1280 = vsel %vm654, %v1276, %v1278
      %v1282 = vsel %vm944, %v1269, 0
      %v1285 = vsel %vm312, %v1279, 0
      %v1288 = vsel %vm312, %v1280, 0
      %1290 = vmatpush.bf16.msra.mxu0 0
      %1291 = vmatpush.bf16.msra.mxu0 0
      %1292 = vmatpush.bf16.msra.mxu0 0
      %1293 = vmatpush.bf16.msra.mxu0 0
      %1294 = vmatpush.bf16.msra.mxu0 0
      %1295 = vmatpush.bf16.msra.mxu0 0
      %1296 = vmatpush.bf16.msra.mxu0 0
      %1297 = vmatpush.bf16.msra.mxu0 %v1285
      %1298 = vmatmul.bf16.gmra.mxu0 %v1282
      %v1299 = vpop.f32.mrf.mxu0
      %v1300 = vadd.f32 0.0, %v1299
      %v1301 = vpop.f32.mrf.mxu0
      %v1302 = vadd.f32 0.0, %v1301
      %1303 = vdwg.mxu0
      %1304 = vmatpush.bf16.msra.mxu0 0
      %1305 = vmatpush.bf16.msra.mxu0 0
      %1306 = vmatpush.bf16.msra.mxu0 0
      %1307 = vmatpush.bf16.msra.mxu0 0
      %1308 = vmatpush.bf16.msra.mxu0 0
      %1309 = vmatpush.bf16.msra.mxu0 0
      %1310 = vmatpush.bf16.msra.mxu0 0
      %1311 = vmatpush.bf16.msra.mxu0 %v1288
      %1312 = vmatmul.bf16.gmra.mxu0 %v1282
      %v1313 = vpop.f32.mrf.mxu0
      %v1314 = vadd.f32 0.0, %v1313
      %v1315 = vpop.f32.mrf.mxu0
      %v1316 = vadd.f32 0.0, %v1315
      %1317 = vdwg.mxu0
      %v1318 = vadd.f32 %v1243, %v1300
      %v1319 = vadd.f32 %v1244, %v1314
      %v1320 = vadd.f32 %v1245, %v1302
      %v1321 = vadd.f32 %v1246, %v1316
      %1322 = vrot.lane.b32.xlu0 %v907, 15
      %v1323 = vpop.permute.xlu0 %1322
      %1324 = vrot.lane.b32.xlu0 %v908, 15
      %v1325 = vpop.permute.xlu0 %1324
      %vm1326 = vcmask 121856
      %v1327 = vsel %vm1326, %v1323, %v1325
      %v1331 = vmul.f32 %v905, %v1323
      %v1332 = vmul.f32 %v906, %v1327
      %v1333 = vmul.f32 %v904, %v1325
      %v1334 = vpack.c.bf16 %v1331, %v1331
      %v1335 = vpack.c.bf16 %v1332, %v1332
      %v1336 = vpack.c.bf16 %v1333, %v1333
      %s1337 = scalar_lea.vmem %s4, 48
      %v1338 = vld [vmem:[%s1337] sm:$0xf]
      %v1339 = vld [vmem:[%s1337 + $0x4] sm:$0xf]
      %v1342 = vunpack.c.l.b16 %v1338
      %v1343 = vunpack.c.l.b16 %v1339
      %v1344 = vpack.c.b16 %v1343, %v1342
      %1348 = vrot.lane.b32.xlu0 %v1334, 113
      %v1349 = vpop.permute.xlu0 %1348
      %1350 = vrot.lane.b32.xlu0 %v1335, 113
      %v1351 = vpop.permute.xlu0 %1350
      %1352 = vrot.lane.b32.xlu0 %v1336, 113
      %v1353 = vpop.permute.xlu0 %1352
      %v1354 = vsel %vm711, %v1349, %v1351
      %v1355 = vsel %vm711, %v1351, %v1353
      %v1357 = vsel %vm944, %v1344, 0
      %v1360 = vsel %vm312, %v1354, 0
      %v1363 = vsel %vm312, %v1355, 0
      %1365 = vmatpush.bf16.msra.mxu0 0
      %1366 = vmatpush.bf16.msra.mxu0 0
      %1367 = vmatpush.bf16.msra.mxu0 0
      %1368 = vmatpush.bf16.msra.mxu0 0
      %1369 = vmatpush.bf16.msra.mxu0 0
      %1370 = vmatpush.bf16.msra.mxu0 0
      %1371 = vmatpush.bf16.msra.mxu0 0
      %1372 = vmatpush.bf16.msra.mxu0 %v1360
      %1373 = vmatmul.bf16.gmra.mxu0 %v1357
      %v1374 = vpop.f32.mrf.mxu0
      %v1375 = vadd.f32 0.0, %v1374
      %v1376 = vpop.f32.mrf.mxu0
      %v1377 = vadd.f32 0.0, %v1376
      %1378 = vdwg.mxu0
      %1379 = vmatpush.bf16.msra.mxu0 0
      %1380 = vmatpush.bf16.msra.mxu0 0
      %1381 = vmatpush.bf16.msra.mxu0 0
      %1382 = vmatpush.bf16.msra.mxu0 0
      %1383 = vmatpush.bf16.msra.mxu0 0
      %1384 = vmatpush.bf16.msra.mxu0 0
      %1385 = vmatpush.bf16.msra.mxu0 0
      %1386 = vmatpush.bf16.msra.mxu0 %v1363
      %1387 = vmatmul.bf16.gmra.mxu0 %v1357
      %v1388 = vpop.f32.mrf.mxu0
      %v1389 = vadd.f32 0.0, %v1388
      %v1390 = vpop.f32.mrf.mxu0
      %v1391 = vadd.f32 0.0, %v1390
      %1392 = vdwg.mxu0
      %v1393 = vadd.f32 %v1318, %v1375
      %v1394 = vadd.f32 %v1319, %v1389
      %v1395 = vadd.f32 %v1320, %v1377
      %v1396 = vadd.f32 %v1321, %v1391
      %s1397 = scalar_lea.vmem %s4, 56
      %v1398 = vld [vmem:[%s1397] sm:$0xf]
      %v1399 = vld [vmem:[%s1397 + $0x4] sm:$0xf]
      %v1402 = vunpack.c.l.b16 %v1398
      %v1403 = vunpack.c.l.b16 %v1399
      %v1404 = vpack.c.b16 %v1403, %v1402
      %1405 = vrot.lane.b32.xlu0 %v891, 112
      %v1406 = vpop.permute.xlu0 %1405
      %1407 = vrot.lane.b32.xlu0 %v892, 112
      %v1408 = vpop.permute.xlu0 %1407
      %1409 = vrot.lane.b32.xlu0 0, 112
      %v1410 = vpop.permute.xlu0 %1409
      %v1411 = vsel %vm779, %v1406, %v1408
      %v1412 = vsel %vm779, %v1408, %v1410
      %v1414 = vsel %vm944, %v1404, 0
      %v1417 = vsel %vm312, %v1411, 0
      %v1420 = vsel %vm312, %v1412, 0
      %1422 = vmatpush.bf16.msra.mxu0 0
      %1423 = vmatpush.bf16.msra.mxu0 0
      %1424 = vmatpush.bf16.msra.mxu0 0
      %1425 = vmatpush.bf16.msra.mxu0 0
      %1426 = vmatpush.bf16.msra.mxu0 0
      %1427 = vmatpush.bf16.msra.mxu0 0
      %1428 = vmatpush.bf16.msra.mxu0 0
      %1429 = vmatpush.bf16.msra.mxu0 %v1417
      %1430 = vmatmul.bf16.gmra.mxu0 %v1414
      %v1431 = vpop.f32.mrf.mxu0
      %v1432 = vadd.f32 0.0, %v1431
      %v1433 = vpop.f32.mrf.mxu0
      %v1434 = vadd.f32 0.0, %v1433
      %1435 = vdwg.mxu0
      %1436 = vmatpush.bf16.msra.mxu0 0
      %1437 = vmatpush.bf16.msra.mxu0 0
      %1438 = vmatpush.bf16.msra.mxu0 0
      %1439 = vmatpush.bf16.msra.mxu0 0
      %1440 = vmatpush.bf16.msra.mxu0 0
      %1441 = vmatpush.bf16.msra.mxu0 0
      %1442 = vmatpush.bf16.msra.mxu0 0
      %1443 = vmatpush.bf16.msra.mxu0 %v1420
      %1444 = vmatmul.bf16.gmra.mxu0 %v1414
      %v1445 = vpop.f32.mrf.mxu0
      %v1446 = vadd.f32 0.0, %v1445
      %v1447 = vpop.f32.mrf.mxu0
      %v1448 = vadd.f32 0.0, %v1447
      %1449 = vdwg.mxu0
      %v1450 = vadd.f32 %v1393, %v1432
      %v1451 = vadd.f32 %v1394, %v1446
      %v1452 = vadd.f32 %v1395, %v1434
      %v1453 = vadd.f32 %v1396, %v1448
      %1454 = vrot.lane.b32.xlu0 %v1046, 17
      %v1455 = vpop.permute.xlu0 %1454
      %1456 = vrot.lane.b32.xlu0 %v1047, 17
      %v1457 = vpop.permute.xlu0 %1456
      %vm1458 = vcmask 138240
      %v1459 = vsel %vm1458, %v1455, %v1457
      %v1463 = vmul.f32 %v905, %v1455
      %v1464 = vmul.f32 %v906, %v1459
      %v1465 = vmul.f32 %v904, %v1457
      %v1466 = vpack.c.bf16 %v1463, %v1463
      %v1467 = vpack.c.bf16 %v1464, %v1464
      %v1468 = vpack.c.bf16 %v1465, %v1465
      %s1469 = scalar_lea.vmem %s4, 64
      %v1470 = vld [vmem:[%s1469] sm:$0xf]
      %v1471 = vld [vmem:[%s1469 + $0x4] sm:$0xf]
      %v1474 = vunpack.c.l.b16 %v1470
      %v1475 = vunpack.c.l.b16 %v1471
      %v1476 = vpack.c.b16 %v1475, %v1474
      %1480 = vrot.lane.b32.xlu0 %v1466, 111
      %v1481 = vpop.permute.xlu0 %1480
      %1482 = vrot.lane.b32.xlu0 %v1467, 111
      %v1483 = vpop.permute.xlu0 %1482
      %1484 = vrot.lane.b32.xlu0 %v1468, 111
      %v1485 = vpop.permute.xlu0 %1484
      %v1486 = vsel %vm823, %v1481, %v1483
      %v1487 = vsel %vm823, %v1483, %v1485
      %v1489 = vsel %vm944, %v1476, 0
      %v1492 = vsel %vm312, %v1486, 0
      %v1495 = vsel %vm312, %v1487, 0
      %1497 = vmatpush.bf16.msra.mxu0 0
      %1498 = vmatpush.bf16.msra.mxu0 0
      %1499 = vmatpush.bf16.msra.mxu0 0
      %1500 = vmatpush.bf16.msra.mxu0 0
      %1501 = vmatpush.bf16.msra.mxu0 0
      %1502 = vmatpush.bf16.msra.mxu0 0
      %1503 = vmatpush.bf16.msra.mxu0 0
      %1504 = vmatpush.bf16.msra.mxu0 %v1492
      %1505 = vmatmul.bf16.gmra.mxu0 %v1489
      %v1506 = vpop.f32.mrf.mxu0
      %v1507 = vadd.f32 0.0, %v1506
      %v1508 = vpop.f32.mrf.mxu0
      %v1509 = vadd.f32 0.0, %v1508
      %1510 = vdwg.mxu0
      %1511 = vmatpush.bf16.msra.mxu0 0
      %1512 = vmatpush.bf16.msra.mxu0 0
      %1513 = vmatpush.bf16.msra.mxu0 0
      %1514 = vmatpush.bf16.msra.mxu0 0
      %1515 = vmatpush.bf16.msra.mxu0 0
      %1516 = vmatpush.bf16.msra.mxu0 0
      %1517 = vmatpush.bf16.msra.mxu0 0
      %1518 = vmatpush.bf16.msra.mxu0 %v1495
      %1519 = vmatmul.bf16.gmra.mxu0 %v1489
      %v1520 = vpop.f32.mrf.mxu0
      %v1521 = vadd.f32 0.0, %v1520
      %v1522 = vpop.f32.mrf.mxu0
      %v1523 = vadd.f32 0.0, %v1522
      %1524 = vdwg.mxu0
      %v1525 = vadd.f32 %v1450, %v1507
      %v1526 = vadd.f32 %v1451, %v1521
      %v1527 = vadd.f32 %v1452, %v1509
      %v1528 = vadd.f32 %v1453, %v1523
      %v1529 = vld [vmem:[%s5] sm:$0xff]
      %v1530 = vld [vmem:[%s5 + $0x8] sm:$0xff]
      %1532 = vset.pattern.permute.xlu0 0
      %1533 = vperm.xlu0 %1532, %v1529
      %v1534 = vpop.permute.xlu0 %1533
      %1537 = vset.pattern.permute.xlu0 0
      %1538 = vperm.xlu0 %1537, %v1530
      %v1539 = vpop.permute.xlu0 %1538
      %v1541 = vadd.f32 %v1525, %v1534
      %v1542 = vadd.f32 %v1526, %v1534
      %v1543 = vadd.f32 %v1527, %v1539
      %v1544 = vadd.f32 %v1528, %v1539
      %1545 = vst [vmem:[%s291] sm:$0xff] %v1541
      %1546 = vst [vmem:[%s291 + $0x8] sm:$0xff] %v1542
      %1547 = vst [vmem:[%s291 + $0x10] sm:$0xff] %v1543
      %1548 = vst [vmem:[%s291 + $0x18] sm:$0xff] %v1544
      %p1549 = scmp.lt.s32.totalorder %s19, 1
      %s1550 = scalar_select %p1549, %s19, 1
      %s1551 = smul.addr %s1550, 2
      %s1552 = smul.addr %s1551, 8
      %s1553 = scalar_lea.vmem %s6, %s1552
      %p1554 = scmp.lt.s32.totalorder %s19, 1
      %s1555 = scalar_select %p1554, %s19, 1
      %s1556 = smul.addr %s1555, 4
      %s1557 = smul.addr %s1556, 8
      %s1558 = scalar_lea.vmem %s7, %s1557
      // Predicated region
      $region45: #{network_hook_forward.1} parent=43 // pred_check
        %p1559 = pneg %p168
      $region46: #{network_hook_forward.1} parent=43 // pred_check_branch
        %1561 = sbr.rel (%p1559) target = $region48
      $region47: #{network_hook_forward.1} parent=43 // pred_region
        _
      $region48: #{network_hook_forward.1} parent=43 // pred_fallthru
        _
      // Predicated region
      $region49: #{network_hook_forward.1} parent=43 // pred_check
        %p1562 = pneg %p194
      $region50: #{network_hook_forward.1} parent=43 // pred_check_branch
        %1564 = sbr.rel (%p1562) target = $region52
      $region51: #{network_hook_forward.1} parent=43 // pred_region
        _
      $region52: #{network_hook_forward.1} parent=43 // pred_fallthru
        _
    $region44: #{network_hook_forward.1} parent=5 // pred_fallthru
      _
    %p1565 = scmp.le.s32.totalorder 2, %s14
    // Predicated region
    $region53: #{network_hook_forward.1} parent=5 // pred_check
      %p1566 = pneg %p1565
    $region54: #{network_hook_forward.1} parent=5 // pred_check_branch
      %1568 = sbr.rel (%p1566) target = $region56
    $region55: #{network_hook_forward.1} parent=5 // pred_region
      %s1569 = ssub.s32 %s14, 2
      // Predicated region
      $region57: #{network_hook_forward.1} parent=55 // pred_check
        %p1570 = pneg %p174
      $region58: #{network_hook_forward.1} parent=55 // pred_check_branch
        %1572 = sbr.rel (%p1570) target = $region60
      $region59: #{network_hook_forward.1} parent=55 // pred_region
        %p1573 = scmp.lt.s32.totalorder %s20, 1
        %s1574 = scalar_select %p1573, %s20, 1
        %s1575 = smul.addr %s1574, 2
        %s1576 = smul.addr %s1575, 8
        %s1577 = scalar_lea.vmem %s6, %s1576
      $region60: #{network_hook_forward.1} parent=55 // pred_fallthru
        _
      // Predicated region
      $region61: #{network_hook_forward.1} parent=55 // pred_check
        %p1578 = pneg %p200
      $region62: #{network_hook_forward.1} parent=55 // pred_check_branch
        %1580 = sbr.rel (%p1578) target = $region64
      $region63: #{network_hook_forward.1} parent=55 // pred_region
        %p1581 = scmp.lt.s32.totalorder %s20, 1
        %s1582 = scalar_select %p1581, %s20, 1
        %s1583 = smul.addr %s1582, 4
        %s1584 = smul.addr %s1583, 8
        %s1585 = scalar_lea.vmem %s7, %s1584
      $region64: #{network_hook_forward.1} parent=55 // pred_fallthru
        _
    $region56: #{network_hook_forward.1} parent=5 // pred_fallthru
      _
  $region6: #{network_hook_forward.1} parent=0 // loop_footer
    %s18 = sadd.s32 1, %s14
  $region7: #{network_hook_forward.1} parent=0 // loop_footer_branch
    %13 = sbr.rel target = $region3
  $region8: #{network_hook_forward.1} parent=0 // loop_exit
    _

</llo_original>
